<compile_context>
chip_gen: v5e
topology: v5e:2x2
jax: 0.10.0
libtpu: 0.0.40
codegen_flags: <defaults>
</compile_context>

<pallas_src>
import functools

import jax
import jax.numpy as jnp
import numpy as np
from jax import lax
from jax.experimental import pallas as pl
from jax.experimental.pallas import tpu as pltpu


def _round_up(x, m):
    return ((x + m - 1) // m) * m


def _chunk_size(T, max_chunk=32):
    """Largest divisor of T that is <= max_chunk (so the grid tiles T exactly)."""
    tc = min(T, max_chunk)
    while T % tc:
        tc -= 1
    return tc


# ---------------------------------------------------------------------------
# Pallas kernel: LSTM recurrence only (input projection already applied).
# Grid axis 0 walks time-chunks sequentially; h/c live in VMEM scratch and
# persist across grid iterations. PyTorch gate order: i, f, g, o.
# ---------------------------------------------------------------------------
def _lstm_recurrence_kernel(Hp, gx_ref, whh_ref, h0_ref, c0_ref,
                            out_ref, cT_ref, h_sc, c_sc):
    tb = pl.program_id(0)

    @pl.when(tb == 0)
    def _():
        h_sc[...] = h0_ref[...]
        c_sc[...] = c0_ref[...]

    whh = whh_ref[...]                     # (Hp, 4Hp) resident weights
    Tc = gx_ref.shape[0]

    def step(i, carry):
        h, c = carry
        # Only the recurrent matmul is on the sequential critical path.
        gates = gx_ref[i] + jnp.dot(h, whh, preferred_element_type=jnp.float32)
        # Gate slices are 128-lane aligned (Hp % 128 == 0) -> free static views.
        i_g = jax.nn.sigmoid(gates[:, 0 * Hp:1 * Hp])
        f_g = jax.nn.sigmoid(gates[:, 1 * Hp:2 * Hp])
        g_g = jnp.tanh(gates[:, 2 * Hp:3 * Hp])
        o_g = jax.nn.sigmoid(gates[:, 3 * Hp:4 * Hp])
        c_new = f_g * c + i_g * g_g
        h_new = o_g * jnp.tanh(c_new)
        out_ref[i] = h_new.astype(out_ref.dtype)
        return h_new, c_new

    h_f, c_f = lax.fori_loop(0, Tc, step, (h_sc[...], c_sc[...]), unroll=True)
    h_sc[...] = h_f
    c_sc[...] = c_f

    @pl.when(tb == pl.num_programs(0) - 1)
    def _():
        cT_ref[...] = c_f.astype(cT_ref.dtype)


def _lstm_layer_recurrence(gx_tbg, w_hh_packed, h0_p, c0_p, Hp, out_dtype,
                           max_chunk=32):
    """Run the sequential part of one LSTM layer.

    gx_tbg     : (T, B, 4*Hp) f32  precomputed x@W_ih + bias (gate-padded)
    w_hh_packed: (Hp, 4*Hp)        recurrent weights (gate-padded, zero pad)
    h0_p, c0_p : (B, Hp) f32       padded initial states
    returns (out (T, B, Hp), c_T (B, Hp))
    """
    T, B, G = gx_tbg.shape
    assert G == 4 * Hp
    Tc = _chunk_size(T, max_chunk)

    kernel = functools.partial(_lstm_recurrence_kernel, Hp)
    grid_spec = pltpu.PrefetchScalarGridSpec(
        num_scalar_prefetch=0,
        grid=(T // Tc,),
        in_specs=[
            # time-chunk of precomputed input gates (pipelined/double-buffered)
            pl.BlockSpec((Tc, B, 4 * Hp), lambda tb: (tb, 0, 0)),
            # resident, single-buffered VMEM arrays (no pipeline double-buffer)
            pl.BlockSpec(memory_space=pltpu.MemorySpace.VMEM),  # W_hh
            pl.BlockSpec(memory_space=pltpu.MemorySpace.VMEM),  # h0
            pl.BlockSpec(memory_space=pltpu.MemorySpace.VMEM),  # c0
        ],
        out_specs=[
            pl.BlockSpec((Tc, B, Hp), lambda tb: (tb, 0, 0)),   # all hidden states
            pl.BlockSpec((B, Hp), lambda tb: (0, 0)),           # final cell state
        ],
        scratch_shapes=[
            pltpu.VMEM((B, Hp), jnp.float32),   # h carry
            pltpu.VMEM((B, Hp), jnp.float32),   # c carry
        ],
    )

    out, cT = pl.pallas_call(
        kernel,
        out_shape=(
            jax.ShapeDtypeStruct((T, B, Hp), out_dtype),
            jax.ShapeDtypeStruct((B, Hp), jnp.float32),
        ),
        grid_spec=grid_spec,
        compiler_params=pltpu.CompilerParams(
            dimension_semantics=("arbitrary",)),   # time is sequential
    )(gx_tbg, w_hh_packed, h0_p, c0_p)
    return out, cT


# ---------------------------------------------------------------------------
# Gate-padded weight packing (PyTorch layout -> lane-aligned transposed layout)
# ---------------------------------------------------------------------------
def _pack_w_ih(w, H, Hp):
    """w: (4H, in_dim) -> (in_dim, 4*Hp), each gate slice starts at a 128-lane
    boundary; padded columns are zero."""
    in_dim = w.shape[1]
    w4 = w.reshape(4, H, in_dim)
    w4 = jnp.pad(w4, ((0, 0), (0, Hp - H), (0, 0)))
    return jnp.transpose(w4, (2, 0, 1)).reshape(in_dim, 4 * Hp)


def _pack_w_rec(w, H, Hp):
    """w: (4H, H) -> (Hp, 4*Hp). Input rows also padded to Hp (zeros)."""
    packed = _pack_w_ih(w, H, Hp)              # (H, 4Hp)
    return jnp.pad(packed, ((0, Hp - H), (0, 0)))


def _pack_bias(b_ih, b_hh, H, Hp):
    b4 = (b_ih + b_hh).reshape(4, H)
    b4 = jnp.pad(b4, ((0, 0), (0, Hp - H)))
    return b4.reshape(1, 4 * Hp)


# ---------------------------------------------------------------------------
# BasicRNNDecoder equivalent (rnn_type='lstm', dropout_ratio=0.0)
# ---------------------------------------------------------------------------
class BasicRNNDecoderPallas:
    def __init__(self, embedding_size, hidden_size, num_dec_layers,
                 rnn_type="lstm", dropout_ratio=0.0, key=None):
        assert rnn_type == "lstm", "this kernel implements the LSTM path"
        # TODO(synk): 'gru'/'rnn' branches and inter-layer dropout (training) not implemented.
        self.rnn_type = rnn_type
        self.num_dec_layers = num_dec_layers
        self.hidden_size = hidden_size
        self.embedding_size = embedding_size

        if key is None:
            key = jax.random.PRNGKey(0)
        H = hidden_size
        Hp = _round_up(H, 128)          # lane-aligned gate boundaries
        self.Hp = Hp
        bound = 1.0 / np.sqrt(H)
        # TODO(synk): bf16 weight storage for v6e/v7x (halves VMEM + MXU-friendly)
        # kept f32 here to match the f32 reference tolerance.
        self.params = []
        for layer in range(num_dec_layers):
            in_dim = embedding_size if layer == 0 else hidden_size
            key, k1, k2, k3, k4 = jax.random.split(key, 5)
            # PyTorch shapes: w_ih [4H, in_dim], w_hh [4H, H], b_ih/b_hh [4H]
            w_ih = jax.random.uniform(k1, (4 * H, in_dim), jnp.float32, -bound, bound)
            w_hh = jax.random.uniform(k2, (4 * H, H), jnp.float32, -bound, bound)
            b_ih = jax.random.uniform(k3, (4 * H,), jnp.float32, -bound, bound)
            b_hh = jax.random.uniform(k4, (4 * H,), jnp.float32, -bound, bound)
            if layer == 0:
                w_ih_packed = _pack_w_ih(w_ih, H, Hp)        # (E, 4Hp)
            else:
                w_ih_packed = _pack_w_rec(w_ih, H, Hp)       # (Hp, 4Hp) — eats padded acts
            self.params.append({
                "w_ih_packed": w_ih_packed,
                "w_hh_packed": _pack_w_rec(w_hh, H, Hp),     # (Hp, 4Hp)
                "bias_packed": _pack_bias(b_ih, b_hh, H, Hp),  # (1, 4Hp)
                # raw PyTorch-layout params kept for the reference check
                "w_ih": w_ih, "w_hh": w_hh, "b_ih": b_ih, "b_hh": b_hh,
            })

    def init_hidden(self, input_embeddings):
        B = input_embeddings.shape[0]
        h0 = jnp.zeros((self.num_dec_layers, B, self.hidden_size), jnp.float32)
        c0 = jnp.zeros((self.num_dec_layers, B, self.hidden_size), jnp.float32)
        return (h0, c0)

    def __call__(self, input_embeddings, hidden_states=None):
        """input_embeddings: [B, T, E] -> (outputs [B, T, H], (h_n, c_n) each [L, B, H])"""
        if hidden_states is None:
            hidden_states = self.init_hidden(input_embeddings)
        h0_all, c0_all = hidden_states

        B, T, _ = input_embeddings.shape
        H, Hp = self.hidden_size, self.Hp
        pad_h = Hp - H
        out_dtype = input_embeddings.dtype

        layer_in = jnp.transpose(input_embeddings, (1, 0, 2))   # (T, B, E) time-major
        h_out, c_out = [], []
        # TODO(synk): fuse all layers into one pallas_call (keep inter-layer acts
        # in VMEM) and add a batch-parallel grid axis for v7x's 2 TensorCores.
        for layer, p in enumerate(self.params):
            # Hoisted input projection: one big (T*B, in) x (in, 4Hp) matmul,
            # bias folded in, no sequential dependency -> full MXU utilization.
            gx = jnp.einsum("tbi,ig->tbg", layer_in, p["w_ih_packed"],
                            preferred_element_type=jnp.float32)
            gx = (gx + p["bias_packed"]).astype(jnp.float32)

            h0_p = jnp.pad(h0_all[layer], ((0, 0), (0, pad_h))).astype(jnp.float32)
            c0_p = jnp.pad(c0_all[layer], ((0, 0), (0, pad_h))).astype(jnp.float32)

            out, cT = _lstm_layer_recurrence(gx, p["w_hh_packed"], h0_p, c0_p,
                                             Hp, out_dtype)
            h_out.append(out[T - 1, :, :H])          # h_T recovered from outputs
            c_out.append(cT[:, :H].astype(out_dtype))
            layer_in = out                            # padded (T, B, Hp) feeds next layer

        outputs = jnp.transpose(layer_in[:, :, :H], (1, 0, 2))   # [B, T, H]
        h_n = jnp.stack(h_out, axis=0)
        c_n = jnp.stack(c_out, axis=0)
        return outputs, (h_n, c_n)


# ---------------------------------------------------------------------------
# Pure-JAX reference (lax.scan) to verify the kernel.
# ---------------------------------------------------------------------------
def _reference_lstm(x_bte, params, h0_all, c0_all):
    H = h0_all.shape[-1]
    layer_in = jnp.transpose(x_bte, (1, 0, 2))  # (T, B, E)
    h_out, c_out = [], []
    for layer, p in enumerate(params):
        w_ih, w_hh, b = p["w_ih"], p["w_hh"], p["b_ih"] + p["b_hh"]

        def step(carry, x_t):
            h, c = carry
            gates = x_t @ w_ih.T + h @ w_hh.T + b
            i = jax.nn.sigmoid(gates[:, 0 * H:1 * H])
            f = jax.nn.sigmoid(gates[:, 1 * H:2 * H])
            g = jnp.tanh(gates[:, 2 * H:3 * H])
            o = jax.nn.sigmoid(gates[:, 3 * H:4 * H])
            c_new = f * c + i * g
            h_new = o * jnp.tanh(c_new)
            return (h_new, c_new), h_new

        (hT, cT), out = lax.scan(step, (h0_all[layer], c0_all[layer]), layer_in)
        h_out.append(hT)
        c_out.append(cT)
        layer_in = out
    return (jnp.transpose(layer_in, (1, 0, 2)),
            (jnp.stack(h_out, 0), jnp.stack(c_out, 0)))


if __name__ == "__main__":
    B, T, E, H, L = 2, 8, 32, 32, 2

    decoder = BasicRNNDecoderPallas(embedding_size=E, hidden_size=H,
                                    num_dec_layers=L, rnn_type="lstm",
                                    key=jax.random.PRNGKey(42))

    x = jax.random.normal(jax.random.PRNGKey(0), (B, T, E), jnp.float32)

    outputs, (h_n, c_n) = decoder(x)   # hidden_states=None -> zero init (like module)
    jax.block_until_ready((outputs, h_n, c_n))

    assert outputs.shape == (B, T, H)
    assert h_n.shape == (L, B, H) and c_n.shape == (L, B, H)

    ref_out, (ref_h, ref_c) = _reference_lstm(
        x, decoder.params,
        jnp.zeros((L, B, H), jnp.float32), jnp.zeros((L, B, H), jnp.float32))
    np.testing.assert_allclose(np.asarray(outputs), np.asarray(ref_out), rtol=1e-5, atol=1e-5)
    np.testing.assert_allclose(np.asarray(h_n), np.asarray(ref_h), rtol=1e-5, atol=1e-5)
    np.testing.assert_allclose(np.asarray(c_n), np.asarray(ref_c), rtol=1e-5, atol=1e-5)

    print("KERNEL_OK")
</pallas_src>

<mosaic_0001>
module attributes {stable_mosaic.version = 11 : i64} {
  func.func @_lstm_recurrence_kernel(%arg0: i32, %arg1: memref<8x2x512xf32, #tpu.memory_space<vmem>>, %arg2: memref<128x512xf32, #tpu.memory_space<vmem>>, %arg3: memref<2x128xf32, #tpu.memory_space<vmem>>, %arg4: memref<2x128xf32, #tpu.memory_space<vmem>>, %arg5: memref<8x2x128xf32, #tpu.memory_space<vmem>>, %arg6: memref<2x128xf32, #tpu.memory_space<vmem>>, %arg7: memref<2x128xf32, #tpu.memory_space<vmem>>, %arg8: memref<2x128xf32, #tpu.memory_space<vmem>>) attributes {dimension_semantics = [#tpu.dimension_semantics<arbitrary>], iteration_bounds = array<i64: 1>, scalar_prefetch = 0 : i64, scratch_operands = 2 : i64, tpu.core_type = #tpu.core_type<tc>, window_params = [{transform_indices = @transform_0, window_bounds = array<i64: 8, 2, 512>}, {pipeline_mode = #tpu.pipeline_mode<synchronous>, transform_indices = @transform_1, window_bounds = array<i64: 128, 512>}, {pipeline_mode = #tpu.pipeline_mode<synchronous>, transform_indices = @transform_2, window_bounds = array<i64: 2, 128>}, {pipeline_mode = #tpu.pipeline_mode<synchronous>, transform_indices = @transform_3, window_bounds = array<i64: 2, 128>}, {transform_indices = @transform_4, window_bounds = array<i64: 8, 2, 128>}, {pipeline_mode = #tpu.pipeline_mode<synchronous>, transform_indices = @transform_5, window_bounds = array<i64: 2, 128>}]} {
    %c0_i32 = arith.constant 0 : i32
    %0 = arith.cmpi eq, %arg0, %c0_i32 : i32
    %1 = arith.extui %0 : i1 to i32
    %c0_i32_0 = arith.constant 0 : i32
    %2 = arith.cmpi ne, %1, %c0_i32_0 : i32
    scf.if %2 {
      %c0_76 = arith.constant 0 : index
      %c0_77 = arith.constant 0 : index
      %283 = vector.load %arg3[%c0_76, %c0_77] : memref<2x128xf32, #tpu.memory_space<vmem>>, vector<2x128xf32>
      %c0_78 = arith.constant 0 : index
      %c0_79 = arith.constant 0 : index
      %284 = vector.load %arg7[%c0_78, %c0_79] : memref<2x128xf32, #tpu.memory_space<vmem>>, vector<2x128xf32>
      tpu.vector_store %arg7[%c0_78, %c0_79], %283 {strides = array<i32>} : memref<2x128xf32, #tpu.memory_space<vmem>>, vector<2x128xf32>,
      %c0_80 = arith.constant 0 : index
      %c0_81 = arith.constant 0 : index
      %285 = vector.load %arg4[%c0_80, %c0_81] : memref<2x128xf32, #tpu.memory_space<vmem>>, vector<2x128xf32>
      %c0_82 = arith.constant 0 : index
      %c0_83 = arith.constant 0 : index
      %286 = vector.load %arg8[%c0_82, %c0_83] : memref<2x128xf32, #tpu.memory_space<vmem>>, vector<2x128xf32>
      tpu.vector_store %arg8[%c0_82, %c0_83], %285 {strides = array<i32>} : memref<2x128xf32, #tpu.memory_space<vmem>>, vector<2x128xf32>,
    } else {
    }
    %c0 = arith.constant 0 : index
    %c0_1 = arith.constant 0 : index
    %3 = vector.load %arg2[%c0, %c0_1] : memref<128x512xf32, #tpu.memory_space<vmem>>, vector<128x512xf32>
    %c0_2 = arith.constant 0 : index
    %c0_3 = arith.constant 0 : index
    %4 = vector.load %arg7[%c0_2, %c0_3] : memref<2x128xf32, #tpu.memory_space<vmem>>, vector<2x128xf32>
    %c0_4 = arith.constant 0 : index
    %c0_5 = arith.constant 0 : index
    %5 = vector.load %arg8[%c0_4, %c0_5] : memref<2x128xf32, #tpu.memory_space<vmem>>, vector<2x128xf32>
    %c0_i32_6 = arith.constant 0 : i32
    %6 = arith.index_cast %c0_i32_6 : i32 to index
    %c0_7 = arith.constant 0 : index
    %c0_8 = arith.constant 0 : index
    %7 = vector.load %arg1[%6, %c0_7, %c0_8] : memref<8x2x512xf32, #tpu.memory_space<vmem>>, vector<1x2x512xf32>
    %8 = vector.shape_cast %7 : vector<1x2x512xf32> to vector<2x512xf32>
    %cst = arith.constant dense<0.000000e+00> : vector<2x512xf32>
    %9 = tpu.matmul %4, %3, %cst {dimension_numbers = #tpu.dot_dimension_numbers<[1], [0], [0], [1], [0, 0, 1, 1], [], []>} : vector<2x128xf32>, vector<128x512xf32>, vector<2x512xf32> -> vector<2x512xf32>
    %10 = arith.addf %8, %9 : vector<2x512xf32>
    %11 = vector.extract_strided_slice %10 {offsets = [0, 0], sizes = [2, 128], strides = [1, 1]} : vector<2x512xf32> to vector<2x128xf32>
    %12 = arith.negf %11 : vector<2x128xf32>
    %13 = math.exp %12 : vector<2x128xf32>
    %cst_9 = arith.constant 1.000000e+00 : f32
    %14 = vector.broadcast %cst_9 : f32 to vector<2x128xf32>
    %15 = arith.addf %14, %13 : vector<2x128xf32>
    %16 = arith.divf %14, %15 : vector<2x128xf32>
    %17 = vector.extract_strided_slice %10 {offsets = [0, 128], sizes = [2, 128], strides = [1, 1]} : vector<2x512xf32> to vector<2x128xf32>
    %18 = arith.negf %17 : vector<2x128xf32>
    %19 = math.exp %18 : vector<2x128xf32>
    %cst_10 = arith.constant 1.000000e+00 : f32
    %20 = vector.broadcast %cst_10 : f32 to vector<2x128xf32>
    %21 = arith.addf %20, %19 : vector<2x128xf32>
    %22 = arith.divf %20, %21 : vector<2x128xf32>
    %23 = vector.extract_strided_slice %10 {offsets = [0, 256], sizes = [2, 128], strides = [1, 1]} : vector<2x512xf32> to vector<2x128xf32>
    %24 = math.tanh %23 : vector<2x128xf32>
    %25 = vector.extract_strided_slice %10 {offsets = [0, 384], sizes = [2, 128], strides = [1, 1]} : vector<2x512xf32> to vector<2x128xf32>
    %26 = arith.negf %25 : vector<2x128xf32>
    %27 = math.exp %26 : vector<2x128xf32>
    %cst_11 = arith.constant 1.000000e+00 : f32
    %28 = vector.broadcast %cst_11 : f32 to vector<2x128xf32>
    %29 = arith.addf %28, %27 : vector<2x128xf32>
    %30 = arith.divf %28, %29 : vector<2x128xf32>
    %31 = arith.mulf %22, %5 : vector<2x128xf32>
    %32 = arith.mulf %16, %24 : vector<2x128xf32>
    %33 = arith.addf %31, %32 : vector<2x128xf32>
    %34 = math.tanh %33 : vector<2x128xf32>
    %35 = arith.mulf %30, %34 : vector<2x128xf32>
    %36 = arith.index_cast %c0_i32_6 : i32 to index
    %c0_12 = arith.constant 0 : index
    %c0_13 = arith.constant 0 : index
    %37 = vector.load %arg5[%36, %c0_12, %c0_13] : memref<8x2x128xf32, #tpu.memory_space<vmem>>, vector<1x2x128xf32>
    %38 = vector.shape_cast %37 : vector<1x2x128xf32> to vector<2x128xf32>
    %39 = vector.shape_cast %35 : vector<2x128xf32> to vector<1x2x128xf32>
    tpu.vector_store %arg5[%36, %c0_12, %c0_13], %39 {strides = array<i32>} : memref<8x2x128xf32, #tpu.memory_space<vmem>>, vector<1x2x128xf32>,
    %c1_i32 = arith.constant 1 : i32
    %40 = arith.index_cast %c1_i32 : i32 to index
    %c0_14 = arith.constant 0 : index
    %c0_15 = arith.constant 0 : index
    %41 = vector.load %arg1[%40, %c0_14, %c0_15] : memref<8x2x512xf32, #tpu.memory_space<vmem>>, vector<1x2x512xf32>
    %42 = vector.shape_cast %41 : vector<1x2x512xf32> to vector<2x512xf32>
    %cst_16 = arith.constant dense<0.000000e+00> : vector<2x512xf32>
    %43 = tpu.matmul %35, %3, %cst_16 {dimension_numbers = #tpu.dot_dimension_numbers<[1], [0], [0], [1], [0, 0, 1, 1], [], []>} : vector<2x128xf32>, vector<128x512xf32>, vector<2x512xf32> -> vector<2x512xf32>
    %44 = arith.addf %42, %43 : vector<2x512xf32>
    %45 = vector.extract_strided_slice %44 {offsets = [0, 0], sizes = [2, 128], strides = [1, 1]} : vector<2x512xf32> to vector<2x128xf32>
    %46 = arith.negf %45 : vector<2x128xf32>
    %47 = math.exp %46 : vector<2x128xf32>
    %cst_17 = arith.constant 1.000000e+00 : f32
    %48 = vector.broadcast %cst_17 : f32 to vector<2x128xf32>
    %49 = arith.addf %48, %47 : vector<2x128xf32>
    %50 = arith.divf %48, %49 : vector<2x128xf32>
    %51 = vector.extract_strided_slice %44 {offsets = [0, 128], sizes = [2, 128], strides = [1, 1]} : vector<2x512xf32> to vector<2x128xf32>
    %52 = arith.negf %51 : vector<2x128xf32>
    %53 = math.exp %52 : vector<2x128xf32>
    %cst_18 = arith.constant 1.000000e+00 : f32
    %54 = vector.broadcast %cst_18 : f32 to vector<2x128xf32>
    %55 = arith.addf %54, %53 : vector<2x128xf32>
    %56 = arith.divf %54, %55 : vector<2x128xf32>
    %57 = vector.extract_strided_slice %44 {offsets = [0, 256], sizes = [2, 128], strides = [1, 1]} : vector<2x512xf32> to vector<2x128xf32>
    %58 = math.tanh %57 : vector<2x128xf32>
    %59 = vector.extract_strided_slice %44 {offsets = [0, 384], sizes = [2, 128], strides = [1, 1]} : vector<2x512xf32> to vector<2x128xf32>
    %60 = arith.negf %59 : vector<2x128xf32>
    %61 = math.exp %60 : vector<2x128xf32>
    %cst_19 = arith.constant 1.000000e+00 : f32
    %62 = vector.broadcast %cst_19 : f32 to vector<2x128xf32>
    %63 = arith.addf %62, %61 : vector<2x128xf32>
    %64 = arith.divf %62, %63 : vector<2x128xf32>
    %65 = arith.mulf %56, %33 : vector<2x128xf32>
    %66 = arith.mulf %50, %58 : vector<2x128xf32>
    %67 = arith.addf %65, %66 : vector<2x128xf32>
    %68 = math.tanh %67 : vector<2x128xf32>
    %69 = arith.mulf %64, %68 : vector<2x128xf32>
    %70 = arith.index_cast %c1_i32 : i32 to index
    %c0_20 = arith.constant 0 : index
    %c0_21 = arith.constant 0 : index
    %71 = vector.load %arg5[%70, %c0_20, %c0_21] : memref<8x2x128xf32, #tpu.memory_space<vmem>>, vector<1x2x128xf32>
    %72 = vector.shape_cast %71 : vector<1x2x128xf32> to vector<2x128xf32>
    %73 = vector.shape_cast %69 : vector<2x128xf32> to vector<1x2x128xf32>
    tpu.vector_store %arg5[%70, %c0_20, %c0_21], %73 {strides = array<i32>} : memref<8x2x128xf32, #tpu.memory_space<vmem>>, vector<1x2x128xf32>,
    %c2_i32 = arith.constant 2 : i32
    %74 = arith.index_cast %c2_i32 : i32 to index
    %c0_22 = arith.constant 0 : index
    %c0_23 = arith.constant 0 : index
    %75 = vector.load %arg1[%74, %c0_22, %c0_23] : memref<8x2x512xf32, #tpu.memory_space<vmem>>, vector<1x2x512xf32>
    %76 = vector.shape_cast %75 : vector<1x2x512xf32> to vector<2x512xf32>
    %cst_24 = arith.constant dense<0.000000e+00> : vector<2x512xf32>
    %77 = tpu.matmul %69, %3, %cst_24 {dimension_numbers = #tpu.dot_dimension_numbers<[1], [0], [0], [1], [0, 0, 1, 1], [], []>} : vector<2x128xf32>, vector<128x512xf32>, vector<2x512xf32> -> vector<2x512xf32>
    %78 = arith.addf %76, %77 : vector<2x512xf32>
    %79 = vector.extract_strided_slice %78 {offsets = [0, 0], sizes = [2, 128], strides = [1, 1]} : vector<2x512xf32> to vector<2x128xf32>
    %80 = arith.negf %79 : vector<2x128xf32>
    %81 = math.exp %80 : vector<2x128xf32>
    %cst_25 = arith.constant 1.000000e+00 : f32
    %82 = vector.broadcast %cst_25 : f32 to vector<2x128xf32>
    %83 = arith.addf %82, %81 : vector<2x128xf32>
    %84 = arith.divf %82, %83 : vector<2x128xf32>
    %85 = vector.extract_strided_slice %78 {offsets = [0, 128], sizes = [2, 128], strides = [1, 1]} : vector<2x512xf32> to vector<2x128xf32>
    %86 = arith.negf %85 : vector<2x128xf32>
    %87 = math.exp %86 : vector<2x128xf32>
    %cst_26 = arith.constant 1.000000e+00 : f32
    %88 = vector.broadcast %cst_26 : f32 to vector<2x128xf32>
    %89 = arith.addf %88, %87 : vector<2x128xf32>
    %90 = arith.divf %88, %89 : vector<2x128xf32>
    %91 = vector.extract_strided_slice %78 {offsets = [0, 256], sizes = [2, 128], strides = [1, 1]} : vector<2x512xf32> to vector<2x128xf32>
    %92 = math.tanh %91 : vector<2x128xf32>
    %93 = vector.extract_strided_slice %78 {offsets = [0, 384], sizes = [2, 128], strides = [1, 1]} : vector<2x512xf32> to vector<2x128xf32>
    %94 = arith.negf %93 : vector<2x128xf32>
    %95 = math.exp %94 : vector<2x128xf32>
    %cst_27 = arith.constant 1.000000e+00 : f32
    %96 = vector.broadcast %cst_27 : f32 to vector<2x128xf32>
    %97 = arith.addf %96, %95 : vector<2x128xf32>
    %98 = arith.divf %96, %97 : vector<2x128xf32>
    %99 = arith.mulf %90, %67 : vector<2x128xf32>
    %100 = arith.mulf %84, %92 : vector<2x128xf32>
    %101 = arith.addf %99, %100 : vector<2x128xf32>
    %102 = math.tanh %101 : vector<2x128xf32>
    %103 = arith.mulf %98, %102 : vector<2x128xf32>
    %104 = arith.index_cast %c2_i32 : i32 to index
    %c0_28 = arith.constant 0 : index
    %c0_29 = arith.constant 0 : index
    %105 = vector.load %arg5[%104, %c0_28, %c0_29] : memref<8x2x128xf32, #tpu.memory_space<vmem>>, vector<1x2x128xf32>
    %106 = vector.shape_cast %105 : vector<1x2x128xf32> to vector<2x128xf32>
    %107 = vector.shape_cast %103 : vector<2x128xf32> to vector<1x2x128xf32>
    tpu.vector_store %arg5[%104, %c0_28, %c0_29], %107 {strides = array<i32>} : memref<8x2x128xf32, #tpu.memory_space<vmem>>, vector<1x2x128xf32>,
    %c3_i32 = arith.constant 3 : i32
    %108 = arith.index_cast %c3_i32 : i32 to index
    %c0_30 = arith.constant 0 : index
    %c0_31 = arith.constant 0 : index
    %109 = vector.load %arg1[%108, %c0_30, %c0_31] : memref<8x2x512xf32, #tpu.memory_space<vmem>>, vector<1x2x512xf32>
    %110 = vector.shape_cast %109 : vector<1x2x512xf32> to vector<2x512xf32>
    %cst_32 = arith.constant dense<0.000000e+00> : vector<2x512xf32>
    %111 = tpu.matmul %103, %3, %cst_32 {dimension_numbers = #tpu.dot_dimension_numbers<[1], [0], [0], [1], [0, 0, 1, 1], [], []>} : vector<2x128xf32>, vector<128x512xf32>, vector<2x512xf32> -> vector<2x512xf32>
    %112 = arith.addf %110, %111 : vector<2x512xf32>
    %113 = vector.extract_strided_slice %112 {offsets = [0, 0], sizes = [2, 128], strides = [1, 1]} : vector<2x512xf32> to vector<2x128xf32>
    %114 = arith.negf %113 : vector<2x128xf32>
    %115 = math.exp %114 : vector<2x128xf32>
    %cst_33 = arith.constant 1.000000e+00 : f32
    %116 = vector.broadcast %cst_33 : f32 to vector<2x128xf32>
    %117 = arith.addf %116, %115 : vector<2x128xf32>
    %118 = arith.divf %116, %117 : vector<2x128xf32>
    %119 = vector.extract_strided_slice %112 {offsets = [0, 128], sizes = [2, 128], strides = [1, 1]} : vector<2x512xf32> to vector<2x128xf32>
    %120 = arith.negf %119 : vector<2x128xf32>
    %121 = math.exp %120 : vector<2x128xf32>
    %cst_34 = arith.constant 1.000000e+00 : f32
    %122 = vector.broadcast %cst_34 : f32 to vector<2x128xf32>
    %123 = arith.addf %122, %121 : vector<2x128xf32>
    %124 = arith.divf %122, %123 : vector<2x128xf32>
    %125 = vector.extract_strided_slice %112 {offsets = [0, 256], sizes = [2, 128], strides = [1, 1]} : vector<2x512xf32> to vector<2x128xf32>
    %126 = math.tanh %125 : vector<2x128xf32>
    %127 = vector.extract_strided_slice %112 {offsets = [0, 384], sizes = [2, 128], strides = [1, 1]} : vector<2x512xf32> to vector<2x128xf32>
    %128 = arith.negf %127 : vector<2x128xf32>
    %129 = math.exp %128 : vector<2x128xf32>
    %cst_35 = arith.constant 1.000000e+00 : f32
    %130 = vector.broadcast %cst_35 : f32 to vector<2x128xf32>
    %131 = arith.addf %130, %129 : vector<2x128xf32>
    %132 = arith.divf %130, %131 : vector<2x128xf32>
    %133 = arith.mulf %124, %101 : vector<2x128xf32>
    %134 = arith.mulf %118, %126 : vector<2x128xf32>
    %135 = arith.addf %133, %134 : vector<2x128xf32>
    %136 = math.tanh %135 : vector<2x128xf32>
    %137 = arith.mulf %132, %136 : vector<2x128xf32>
    %138 = arith.index_cast %c3_i32 : i32 to index
    %c0_36 = arith.constant 0 : index
    %c0_37 = arith.constant 0 : index
    %139 = vector.load %arg5[%138, %c0_36, %c0_37] : memref<8x2x128xf32, #tpu.memory_space<vmem>>, vector<1x2x128xf32>
    %140 = vector.shape_cast %139 : vector<1x2x128xf32> to vector<2x128xf32>
    %141 = vector.shape_cast %137 : vector<2x128xf32> to vector<1x2x128xf32>
    tpu.vector_store %arg5[%138, %c0_36, %c0_37], %141 {strides = array<i32>} : memref<8x2x128xf32, #tpu.memory_space<vmem>>, vector<1x2x128xf32>,
    %c4_i32 = arith.constant 4 : i32
    %142 = arith.index_cast %c4_i32 : i32 to index
    %c0_38 = arith.constant 0 : index
    %c0_39 = arith.constant 0 : index
    %143 = vector.load %arg1[%142, %c0_38, %c0_39] : memref<8x2x512xf32, #tpu.memory_space<vmem>>, vector<1x2x512xf32>
    %144 = vector.shape_cast %143 : vector<1x2x512xf32> to vector<2x512xf32>
    %cst_40 = arith.constant dense<0.000000e+00> : vector<2x512xf32>
    %145 = tpu.matmul %137, %3, %cst_40 {dimension_numbers = #tpu.dot_dimension_numbers<[1], [0], [0], [1], [0, 0, 1, 1], [], []>} : vector<2x128xf32>, vector<128x512xf32>, vector<2x512xf32> -> vector<2x512xf32>
    %146 = arith.addf %144, %145 : vector<2x512xf32>
    %147 = vector.extract_strided_slice %146 {offsets = [0, 0], sizes = [2, 128], strides = [1, 1]} : vector<2x512xf32> to vector<2x128xf32>
    %148 = arith.negf %147 : vector<2x128xf32>
    %149 = math.exp %148 : vector<2x128xf32>
    %cst_41 = arith.constant 1.000000e+00 : f32
    %150 = vector.broadcast %cst_41 : f32 to vector<2x128xf32>
    %151 = arith.addf %150, %149 : vector<2x128xf32>
    %152 = arith.divf %150, %151 : vector<2x128xf32>
    %153 = vector.extract_strided_slice %146 {offsets = [0, 128], sizes = [2, 128], strides = [1, 1]} : vector<2x512xf32> to vector<2x128xf32>
    %154 = arith.negf %153 : vector<2x128xf32>
    %155 = math.exp %154 : vector<2x128xf32>
    %cst_42 = arith.constant 1.000000e+00 : f32
    %156 = vector.broadcast %cst_42 : f32 to vector<2x128xf32>
    %157 = arith.addf %156, %155 : vector<2x128xf32>
    %158 = arith.divf %156, %157 : vector<2x128xf32>
    %159 = vector.extract_strided_slice %146 {offsets = [0, 256], sizes = [2, 128], strides = [1, 1]} : vector<2x512xf32> to vector<2x128xf32>
    %160 = math.tanh %159 : vector<2x128xf32>
    %161 = vector.extract_strided_slice %146 {offsets = [0, 384], sizes = [2, 128], strides = [1, 1]} : vector<2x512xf32> to vector<2x128xf32>
    %162 = arith.negf %161 : vector<2x128xf32>
    %163 = math.exp %162 : vector<2x128xf32>
    %cst_43 = arith.constant 1.000000e+00 : f32
    %164 = vector.broadcast %cst_43 : f32 to vector<2x128xf32>
    %165 = arith.addf %164, %163 : vector<2x128xf32>
    %166 = arith.divf %164, %165 : vector<2x128xf32>
    %167 = arith.mulf %158, %135 : vector<2x128xf32>
    %168 = arith.mulf %152, %160 : vector<2x128xf32>
    %169 = arith.addf %167, %168 : vector<2x128xf32>
    %170 = math.tanh %169 : vector<2x128xf32>
    %171 = arith.mulf %166, %170 : vector<2x128xf32>
    %172 = arith.index_cast %c4_i32 : i32 to index
    %c0_44 = arith.constant 0 : index
    %c0_45 = arith.constant 0 : index
    %173 = vector.load %arg5[%172, %c0_44, %c0_45] : memref<8x2x128xf32, #tpu.memory_space<vmem>>, vector<1x2x128xf32>
    %174 = vector.shape_cast %173 : vector<1x2x128xf32> to vector<2x128xf32>
    %175 = vector.shape_cast %171 : vector<2x128xf32> to vector<1x2x128xf32>
    tpu.vector_store %arg5[%172, %c0_44, %c0_45], %175 {strides = array<i32>} : memref<8x2x128xf32, #tpu.memory_space<vmem>>, vector<1x2x128xf32>,
    %c5_i32 = arith.constant 5 : i32
    %176 = arith.index_cast %c5_i32 : i32 to index
    %c0_46 = arith.constant 0 : index
    %c0_47 = arith.constant 0 : index
    %177 = vector.load %arg1[%176, %c0_46, %c0_47] : memref<8x2x512xf32, #tpu.memory_space<vmem>>, vector<1x2x512xf32>
    %178 = vector.shape_cast %177 : vector<1x2x512xf32> to vector<2x512xf32>
    %cst_48 = arith.constant dense<0.000000e+00> : vector<2x512xf32>
    %179 = tpu.matmul %171, %3, %cst_48 {dimension_numbers = #tpu.dot_dimension_numbers<[1], [0], [0], [1], [0, 0, 1, 1], [], []>} : vector<2x128xf32>, vector<128x512xf32>, vector<2x512xf32> -> vector<2x512xf32>
    %180 = arith.addf %178, %179 : vector<2x512xf32>
    %181 = vector.extract_strided_slice %180 {offsets = [0, 0], sizes = [2, 128], strides = [1, 1]} : vector<2x512xf32> to vector<2x128xf32>
    %182 = arith.negf %181 : vector<2x128xf32>
    %183 = math.exp %182 : vector<2x128xf32>
    %cst_49 = arith.constant 1.000000e+00 : f32
    %184 = vector.broadcast %cst_49 : f32 to vector<2x128xf32>
    %185 = arith.addf %184, %183 : vector<2x128xf32>
    %186 = arith.divf %184, %185 : vector<2x128xf32>
    %187 = vector.extract_strided_slice %180 {offsets = [0, 128], sizes = [2, 128], strides = [1, 1]} : vector<2x512xf32> to vector<2x128xf32>
    %188 = arith.negf %187 : vector<2x128xf32>
    %189 = math.exp %188 : vector<2x128xf32>
    %cst_50 = arith.constant 1.000000e+00 : f32
    %190 = vector.broadcast %cst_50 : f32 to vector<2x128xf32>
    %191 = arith.addf %190, %189 : vector<2x128xf32>
    %192 = arith.divf %190, %191 : vector<2x128xf32>
    %193 = vector.extract_strided_slice %180 {offsets = [0, 256], sizes = [2, 128], strides = [1, 1]} : vector<2x512xf32> to vector<2x128xf32>
    %194 = math.tanh %193 : vector<2x128xf32>
    %195 = vector.extract_strided_slice %180 {offsets = [0, 384], sizes = [2, 128], strides = [1, 1]} : vector<2x512xf32> to vector<2x128xf32>
    %196 = arith.negf %195 : vector<2x128xf32>
    %197 = math.exp %196 : vector<2x128xf32>
    %cst_51 = arith.constant 1.000000e+00 : f32
    %198 = vector.broadcast %cst_51 : f32 to vector<2x128xf32>
    %199 = arith.addf %198, %197 : vector<2x128xf32>
    %200 = arith.divf %198, %199 : vector<2x128xf32>
    %201 = arith.mulf %192, %169 : vector<2x128xf32>
    %202 = arith.mulf %186, %194 : vector<2x128xf32>
    %203 = arith.addf %201, %202 : vector<2x128xf32>
    %204 = math.tanh %203 : vector<2x128xf32>
    %205 = arith.mulf %200, %204 : vector<2x128xf32>
    %206 = arith.index_cast %c5_i32 : i32 to index
    %c0_52 = arith.constant 0 : index
    %c0_53 = arith.constant 0 : index
    %207 = vector.load %arg5[%206, %c0_52, %c0_53] : memref<8x2x128xf32, #tpu.memory_space<vmem>>, vector<1x2x128xf32>
    %208 = vector.shape_cast %207 : vector<1x2x128xf32> to vector<2x128xf32>
    %209 = vector.shape_cast %205 : vector<2x128xf32> to vector<1x2x128xf32>
    tpu.vector_store %arg5[%206, %c0_52, %c0_53], %209 {strides = array<i32>} : memref<8x2x128xf32, #tpu.memory_space<vmem>>, vector<1x2x128xf32>,
    %c6_i32 = arith.constant 6 : i32
    %210 = arith.index_cast %c6_i32 : i32 to index
    %c0_54 = arith.constant 0 : index
    %c0_55 = arith.constant 0 : index
    %211 = vector.load %arg1[%210, %c0_54, %c0_55] : memref<8x2x512xf32, #tpu.memory_space<vmem>>, vector<1x2x512xf32>
    %212 = vector.shape_cast %211 : vector<1x2x512xf32> to vector<2x512xf32>
    %cst_56 = arith.constant dense<0.000000e+00> : vector<2x512xf32>
    %213 = tpu.matmul %205, %3, %cst_56 {dimension_numbers = #tpu.dot_dimension_numbers<[1], [0], [0], [1], [0, 0, 1, 1], [], []>} : vector<2x128xf32>, vector<128x512xf32>, vector<2x512xf32> -> vector<2x512xf32>
    %214 = arith.addf %212, %213 : vector<2x512xf32>
    %215 = vector.extract_strided_slice %214 {offsets = [0, 0], sizes = [2, 128], strides = [1, 1]} : vector<2x512xf32> to vector<2x128xf32>
    %216 = arith.negf %215 : vector<2x128xf32>
    %217 = math.exp %216 : vector<2x128xf32>
    %cst_57 = arith.constant 1.000000e+00 : f32
    %218 = vector.broadcast %cst_57 : f32 to vector<2x128xf32>
    %219 = arith.addf %218, %217 : vector<2x128xf32>
    %220 = arith.divf %218, %219 : vector<2x128xf32>
    %221 = vector.extract_strided_slice %214 {offsets = [0, 128], sizes = [2, 128], strides = [1, 1]} : vector<2x512xf32> to vector<2x128xf32>
    %222 = arith.negf %221 : vector<2x128xf32>
    %223 = math.exp %222 : vector<2x128xf32>
    %cst_58 = arith.constant 1.000000e+00 : f32
    %224 = vector.broadcast %cst_58 : f32 to vector<2x128xf32>
    %225 = arith.addf %224, %223 : vector<2x128xf32>
    %226 = arith.divf %224, %225 : vector<2x128xf32>
    %227 = vector.extract_strided_slice %214 {offsets = [0, 256], sizes = [2, 128], strides = [1, 1]} : vector<2x512xf32> to vector<2x128xf32>
    %228 = math.tanh %227 : vector<2x128xf32>
    %229 = vector.extract_strided_slice %214 {offsets = [0, 384], sizes = [2, 128], strides = [1, 1]} : vector<2x512xf32> to vector<2x128xf32>
    %230 = arith.negf %229 : vector<2x128xf32>
    %231 = math.exp %230 : vector<2x128xf32>
    %cst_59 = arith.constant 1.000000e+00 : f32
    %232 = vector.broadcast %cst_59 : f32 to vector<2x128xf32>
    %233 = arith.addf %232, %231 : vector<2x128xf32>
    %234 = arith.divf %232, %233 : vector<2x128xf32>
    %235 = arith.mulf %226, %203 : vector<2x128xf32>
    %236 = arith.mulf %220, %228 : vector<2x128xf32>
    %237 = arith.addf %235, %236 : vector<2x128xf32>
    %238 = math.tanh %237 : vector<2x128xf32>
    %239 = arith.mulf %234, %238 : vector<2x128xf32>
    %240 = arith.index_cast %c6_i32 : i32 to index
    %c0_60 = arith.constant 0 : index
    %c0_61 = arith.constant 0 : index
    %241 = vector.load %arg5[%240, %c0_60, %c0_61] : memref<8x2x128xf32, #tpu.memory_space<vmem>>, vector<1x2x128xf32>
    %242 = vector.shape_cast %241 : vector<1x2x128xf32> to vector<2x128xf32>
    %243 = vector.shape_cast %239 : vector<2x128xf32> to vector<1x2x128xf32>
    tpu.vector_store %arg5[%240, %c0_60, %c0_61], %243 {strides = array<i32>} : memref<8x2x128xf32, #tpu.memory_space<vmem>>, vector<1x2x128xf32>,
    %c7_i32 = arith.constant 7 : i32
    %244 = arith.index_cast %c7_i32 : i32 to index
    %c0_62 = arith.constant 0 : index
    %c0_63 = arith.constant 0 : index
    %245 = vector.load %arg1[%244, %c0_62, %c0_63] : memref<8x2x512xf32, #tpu.memory_space<vmem>>, vector<1x2x512xf32>
    %246 = vector.shape_cast %245 : vector<1x2x512xf32> to vector<2x512xf32>
    %cst_64 = arith.constant dense<0.000000e+00> : vector<2x512xf32>
    %247 = tpu.matmul %239, %3, %cst_64 {dimension_numbers = #tpu.dot_dimension_numbers<[1], [0], [0], [1], [0, 0, 1, 1], [], []>} : vector<2x128xf32>, vector<128x512xf32>, vector<2x512xf32> -> vector<2x512xf32>
    %248 = arith.addf %246, %247 : vector<2x512xf32>
    %249 = vector.extract_strided_slice %248 {offsets = [0, 0], sizes = [2, 128], strides = [1, 1]} : vector<2x512xf32> to vector<2x128xf32>
    %250 = arith.negf %249 : vector<2x128xf32>
    %251 = math.exp %250 : vector<2x128xf32>
    %cst_65 = arith.constant 1.000000e+00 : f32
    %252 = vector.broadcast %cst_65 : f32 to vector<2x128xf32>
    %253 = arith.addf %252, %251 : vector<2x128xf32>
    %254 = arith.divf %252, %253 : vector<2x128xf32>
    %255 = vector.extract_strided_slice %248 {offsets = [0, 128], sizes = [2, 128], strides = [1, 1]} : vector<2x512xf32> to vector<2x128xf32>
    %256 = arith.negf %255 : vector<2x128xf32>
    %257 = math.exp %256 : vector<2x128xf32>
    %cst_66 = arith.constant 1.000000e+00 : f32
    %258 = vector.broadcast %cst_66 : f32 to vector<2x128xf32>
    %259 = arith.addf %258, %257 : vector<2x128xf32>
    %260 = arith.divf %258, %259 : vector<2x128xf32>
    %261 = vector.extract_strided_slice %248 {offsets = [0, 256], sizes = [2, 128], strides = [1, 1]} : vector<2x512xf32> to vector<2x128xf32>
    %262 = math.tanh %261 : vector<2x128xf32>
    %263 = vector.extract_strided_slice %248 {offsets = [0, 384], sizes = [2, 128], strides = [1, 1]} : vector<2x512xf32> to vector<2x128xf32>
    %264 = arith.negf %263 : vector<2x128xf32>
    %265 = math.exp %264 : vector<2x128xf32>
    %cst_67 = arith.constant 1.000000e+00 : f32
    %266 = vector.broadcast %cst_67 : f32 to vector<2x128xf32>
    %267 = arith.addf %266, %265 : vector<2x128xf32>
    %268 = arith.divf %266, %267 : vector<2x128xf32>
    %269 = arith.mulf %260, %237 : vector<2x128xf32>
    %270 = arith.mulf %254, %262 : vector<2x128xf32>
    %271 = arith.addf %269, %270 : vector<2x128xf32>
    %272 = math.tanh %271 : vector<2x128xf32>
    %273 = arith.mulf %268, %272 : vector<2x128xf32>
    %274 = arith.index_cast %c7_i32 : i32 to index
    %c0_68 = arith.constant 0 : index
    %c0_69 = arith.constant 0 : index
    %275 = vector.load %arg5[%274, %c0_68, %c0_69] : memref<8x2x128xf32, #tpu.memory_space<vmem>>, vector<1x2x128xf32>
    %276 = vector.shape_cast %275 : vector<1x2x128xf32> to vector<2x128xf32>
    %277 = vector.shape_cast %273 : vector<2x128xf32> to vector<1x2x128xf32>
    tpu.vector_store %arg5[%274, %c0_68, %c0_69], %277 {strides = array<i32>} : memref<8x2x128xf32, #tpu.memory_space<vmem>>, vector<1x2x128xf32>,
    %c8_i32 = arith.constant 8 : i32
    %c0_70 = arith.constant 0 : index
    %c0_71 = arith.constant 0 : index
    %278 = vector.load %arg7[%c0_70, %c0_71] : memref<2x128xf32, #tpu.memory_space<vmem>>, vector<2x128xf32>
    tpu.vector_store %arg7[%c0_70, %c0_71], %273 {strides = array<i32>} : memref<2x128xf32, #tpu.memory_space<vmem>>, vector<2x128xf32>,
    %c0_72 = arith.constant 0 : index
    %c0_73 = arith.constant 0 : index
    %279 = vector.load %arg8[%c0_72, %c0_73] : memref<2x128xf32, #tpu.memory_space<vmem>>, vector<2x128xf32>
    tpu.vector_store %arg8[%c0_72, %c0_73], %271 {strides = array<i32>} : memref<2x128xf32, #tpu.memory_space<vmem>>, vector<2x128xf32>,
    %c0_i32_74 = arith.constant 0 : i32
    %280 = arith.cmpi eq, %arg0, %c0_i32_74 : i32
    %281 = arith.extui %280 : i1 to i32
    %c0_i32_75 = arith.constant 0 : i32
    %282 = arith.cmpi ne, %281, %c0_i32_75 : i32
    scf.if %282 {
      %c0_76 = arith.constant 0 : index
      %c0_77 = arith.constant 0 : index
      %283 = vector.load %arg6[%c0_76, %c0_77] : memref<2x128xf32, #tpu.memory_space<vmem>>, vector<2x128xf32>
      tpu.vector_store %arg6[%c0_76, %c0_77], %271 {strides = array<i32>} : memref<2x128xf32, #tpu.memory_space<vmem>>, vector<2x128xf32>,
    } else {
    }
    return
  }
  func.func @transform_0(%arg0: i32) -> (i32, i32, i32) {
    %c0_i32 = arith.constant 0 : i32
    %c0_i32_0 = arith.constant 0 : i32
    %c0_i32_1 = arith.constant 0 : i32
    return %arg0, %c0_i32, %c0_i32_0 : i32, i32, i32
  }
  func.func @transform_1(%arg0: i32) -> (i32, i32) {
    %c0_i32 = arith.constant 0 : i32
    %c0_i32_0 = arith.constant 0 : i32
    %c0_i32_1 = arith.constant 0 : i32
    return %c0_i32, %c0_i32_0 : i32, i32
  }
  func.func @transform_2(%arg0: i32) -> (i32, i32) {
    %c0_i32 = arith.constant 0 : i32
    %c0_i32_0 = arith.constant 0 : i32
    %c0_i32_1 = arith.constant 0 : i32
    return %c0_i32, %c0_i32_0 : i32, i32
  }
  func.func @transform_3(%arg0: i32) -> (i32, i32) {
    %c0_i32 = arith.constant 0 : i32
    %c0_i32_0 = arith.constant 0 : i32
    %c0_i32_1 = arith.constant 0 : i32
    return %c0_i32, %c0_i32_0 : i32, i32
  }
  func.func @transform_4(%arg0: i32) -> (i32, i32, i32) {
    %c0_i32 = arith.constant 0 : i32
    %c0_i32_0 = arith.constant 0 : i32
    %c0_i32_1 = arith.constant 0 : i32
    return %arg0, %c0_i32, %c0_i32_0 : i32, i32, i32
  }
  func.func @transform_5(%arg0: i32) -> (i32, i32) {
    %c0_i32 = arith.constant 0 : i32
    %c0_i32_0 = arith.constant 0 : i32
    %c0_i32_1 = arith.constant 0 : i32
    return %c0_i32, %c0_i32_0 : i32, i32
  }
}

</mosaic_0001>

<llo_original>
// kernel: tpu_custom_call.1
$region0: #{tpu_custom_call.1}
  #allocation0 [shape = 'u32[]', space=smem, size = 0x4, offset = 0x4, fixed_abs, tag = 'smem constant byte address 0x4 - core index']
  #allocation1 [shape = 'u32[72,128]{1,0:T(1,128)}', space=vmem, size = 0x9000, scoped, tag = 'internal scratch']
  #allocation2 [shape = 'f32[2,128]{1,0:T(2,128)}', space=vmem, size = 0x400, scoped, tag = 'scratch operand']
  #allocation3 [shape = 'f32[2,128]{1,0:T(2,128)}', space=vmem, size = 0x400, scoped, tag = 'scratch operand']
  %s0 = inlined_call_operand.hbm [shape: f32[8,2,512], index: 0, kind: input, shape index: {}]
  %s1 = inlined_call_operand.hbm [shape: f32[128,512], index: 1, kind: input, shape index: {}]
  %s2 = inlined_call_operand.hbm [shape: f32[2,128], index: 2, kind: input, shape index: {}]
  %s3 = inlined_call_operand.vmem [shape: f32[2,128], index: 3, kind: input, shape index: {}]
  %s4 = inlined_call_operand.hbm [shape: f32[8,2,128], index: 4, kind: output, shape index: {0}]
  %s5 = inlined_call_operand.hbm [shape: f32[2,128], index: 5, kind: output, shape index: {1}]
  %6 = xla_tuple %s4, %s5
  %s7 = sld [smem:[#allocation0]]
  $region54: #{tpu_custom_call.1} parent=0
    _
  %s9 = ssub.s32 1, %s7
  %s10 = scalar_select 0, %s9, %s7
  $region1: #{tpu_custom_call.1} parent=0
    #allocation4 [shape = 'u8[32768]{0}', space=vmem, size = 0x8000, scoped, tag = 'input window, operand 0, single buffered']
    #allocation5 [shape = 's32[1]{0}', space=sflag, size = 0x4, scoped, tag = 'scoped memory for tpu_custom_call.1']
    #allocation6 [shape = 's32[1]{0}', space=sflag, size = 0x4, scoped, tag = 'scoped memory for tpu_custom_call.1']
    #allocation7 [shape = 'u8[262144]{0}', space=vmem, size = 0x40000, scoped, tag = 'input window, operand 1, single buffered']
    #allocation8 [shape = 's32[1]{0}', space=sflag, size = 0x4, scoped, tag = 'scoped memory for tpu_custom_call.1']
    #allocation9 [shape = 'u8[1024]{0}', space=vmem, size = 0x400, scoped, tag = 'input window, operand 2, single buffered']
    #allocation10 [shape = 'u8[8192]{0}', space=vmem, size = 0x2000, scoped, tag = 'output window, operand 0, single buffered']
    #allocation11 [shape = 'u8[1024]{0}', space=vmem, size = 0x400, scoped, tag = 'output window, operand 1, single buffered']
    #allocation12 [shape = 's32[1]{0}', space=sflag, size = 0x4, scoped, tag = 'scoped memory for tpu_custom_call.1']
    %11 = vsyncpa [#allocation5], 0
    %12 = vsyncpa [#allocation8], 0
    %13 = vsyncpa [#allocation6], 0
    %14 = vsyncpa [#allocation12], 0
    // Predicated region
    $region2: #{tpu_custom_call.1} parent=1 // pred_check
      _
    $region3: #{tpu_custom_call.1} parent=1 // pred_check_branch
      %16 = sbr.rel (0) target = $region5
    $region4: #{tpu_custom_call.1} parent=1 // pred_region
      %18 = vsyncadd [#allocation5], 0
      %s19 = sshll.u32 %s0, 4
      %s20 = int_to_ptr.hbm [resolvable:$true] %s19
      %s21 = sshll.u32 [#allocation4], 4
      %s22 = int_to_ptr.vmem [resolvable:$true] %s21
      %27 = dma.hbm_to_vmem [thread:$0]  %s20, 1024, %s22, [#allocation5], 128, 128, 8
    $region5: #{tpu_custom_call.1} parent=1 // pred_fallthru
      _
    // Predicated region
    $region6: #{tpu_custom_call.1} parent=1 // pred_check
      _
    $region7: #{tpu_custom_call.1} parent=1 // pred_check_branch
      %29 = sbr.rel (0) target = $region9
    $region8: #{tpu_custom_call.1} parent=1 // pred_region
      %31 = vsyncadd [#allocation8], 0
      %s32 = sshll.u32 %s1, 4
      %s33 = int_to_ptr.hbm [resolvable:$true] %s32
      %s34 = sshll.u32 [#allocation7], 4
      %s35 = int_to_ptr.vmem [resolvable:$true] %s34
      %40 = dma.hbm_to_vmem [thread:$0]  %s33, 8192, %s35, [#allocation8], 512, 512, 32
    $region9: #{tpu_custom_call.1} parent=1 // pred_fallthru
      _
    // Predicated region
    $region10: #{tpu_custom_call.1} parent=1 // pred_check
      _
    $region11: #{tpu_custom_call.1} parent=1 // pred_check_branch
      %42 = sbr.rel (0) target = $region13
    $region12: #{tpu_custom_call.1} parent=1 // pred_region
      %44 = vsyncadd [#allocation8], 0
      %s46 = sshll.u32 %s2, 4
      %s47 = int_to_ptr.hbm [resolvable:$true] %s46
      %s48 = sshll.u32 [#allocation9], 4
      %s49 = int_to_ptr.vmem [resolvable:$true] %s48
      %51 = dma.hbm_to_vmem [thread:$0]  %s47, 32, %s49, [#allocation8]
    $region13: #{tpu_custom_call.1} parent=1 // pred_fallthru
      _
    // Predicated region
    $region14: #{tpu_custom_call.1} parent=1 // pred_check
      _
    $region15: #{tpu_custom_call.1} parent=1 // pred_check_branch
      %53 = sbr.rel (0) target = $region17
    $region16: #{tpu_custom_call.1} parent=1 // pred_region
      _
    $region17: #{tpu_custom_call.1} parent=1 // pred_fallthru
      _
    // Predicated region
    $region18: #{tpu_custom_call.1} parent=1 // pred_check
      _
    $region19: #{tpu_custom_call.1} parent=1 // pred_check_branch
      %55 = sbr.rel (0) target = $region21
    $region20: #{tpu_custom_call.1} parent=1 // pred_region
      %57 = dma.done [#allocation5], 1024
    $region21: #{tpu_custom_call.1} parent=1 // pred_fallthru
      _
    // Predicated region
    $region22: #{tpu_custom_call.1} parent=1 // pred_check
      _
    $region23: #{tpu_custom_call.1} parent=1 // pred_check_branch
      %59 = sbr.rel (0) target = $region25
    $region24: #{tpu_custom_call.1} parent=1 // pred_region
      %61 = dma.done [#allocation8], 8192
    $region25: #{tpu_custom_call.1} parent=1 // pred_fallthru
      _
    // Predicated region
    $region26: #{tpu_custom_call.1} parent=1 // pred_check
      _
    $region27: #{tpu_custom_call.1} parent=1 // pred_check_branch
      %63 = sbr.rel (0) target = $region29
    $region28: #{tpu_custom_call.1} parent=1 // pred_region
      %65 = dma.done [#allocation8], 32
    $region29: #{tpu_custom_call.1} parent=1 // pred_fallthru
      _
    %p66 = scmp.eq.s32.totalorder 0, 0
    // Predicated region
    $region30: #{tpu_custom_call.1} parent=1 // pred_check
      %p67 = pneg %p66
    $region31: #{tpu_custom_call.1} parent=1 // pred_check_branch
      %69 = sbr.rel (%p67) target = $region33
    $region32: #{tpu_custom_call.1} parent=1 // pred_region
      %v70 = vld [vmem:[#allocation9] sm:$0x3]
      %71 = vst [vmem:[#allocation2] sm:$0x3] %v70
      %v72 = vld [vmem:[%s3] sm:$0x3]
      %73 = vst [vmem:[#allocation3] sm:$0x3] %v72
    $region33: #{tpu_custom_call.1} parent=1 // pred_fallthru
      _
    %v74 = vld [vmem:[#allocation7] sm:$0xff]
    %v75 = vld [vmem:[#allocation7 + $0x8] sm:$0xff]
    %v76 = vld [vmem:[#allocation7 + $0x10] sm:$0xff]
    %v77 = vld [vmem:[#allocation7 + $0x18] sm:$0xff]
    %v78 = vld [vmem:[#allocation7 + $0x20] sm:$0xff]
    %v79 = vld [vmem:[#allocation7 + $0x28] sm:$0xff]
    %v80 = vld [vmem:[#allocation7 + $0x30] sm:$0xff]
    %v81 = vld [vmem:[#allocation7 + $0x38] sm:$0xff]
    %v82 = vld [vmem:[#allocation7 + $0x40] sm:$0xff]
    %v83 = vld [vmem:[#allocation7 + $0x48] sm:$0xff]
    %v84 = vld [vmem:[#allocation7 + $0x50] sm:$0xff]
    %v85 = vld [vmem:[#allocation7 + $0x58] sm:$0xff]
    %v86 = vld [vmem:[#allocation7 + $0x60] sm:$0xff]
    %v87 = vld [vmem:[#allocation7 + $0x68] sm:$0xff]
    %v88 = vld [vmem:[#allocation7 + $0x70] sm:$0xff]
    %v89 = vld [vmem:[#allocation7 + $0x78] sm:$0xff]
    %v90 = vld [vmem:[#allocation7 + $0x80] sm:$0xff]
    %v91 = vld [vmem:[#allocation7 + $0x88] sm:$0xff]
    %v92 = vld [vmem:[#allocation7 + $0x90] sm:$0xff]
    %v93 = vld [vmem:[#allocation7 + $0x98] sm:$0xff]
    %v94 = vld [vmem:[#allocation7 + $0xa0] sm:$0xff]
    %v95 = vld [vmem:[#allocation7 + $0xa8] sm:$0xff]
    %v96 = vld [vmem:[#allocation7 + $0xb0] sm:$0xff]
    %v97 = vld [vmem:[#allocation7 + $0xb8] sm:$0xff]
    %v98 = vld [vmem:[#allocation7 + $0xc0] sm:$0xff]
    %v99 = vld [vmem:[#allocation7 + $0xc8] sm:$0xff]
    %v100 = vld [vmem:[#allocation7 + $0xd0] sm:$0xff]
    %v101 = vld [vmem:[#allocation7 + $0xd8] sm:$0xff]
    %v102 = vld [vmem:[#allocation7 + $0xe0] sm:$0xff]
    %v103 = vld [vmem:[#allocation7 + $0xe8] sm:$0xff]
    %v104 = vld [vmem:[#allocation7 + $0xf0] sm:$0xff]
    %v105 = vld [vmem:[#allocation7 + $0xf8] sm:$0xff]
    %v106 = vld [vmem:[#allocation7 + $0x100] sm:$0xff]
    %v107 = vld [vmem:[#allocation7 + $0x108] sm:$0xff]
    %v108 = vld [vmem:[#allocation7 + $0x110] sm:$0xff]
    %v109 = vld [vmem:[#allocation7 + $0x118] sm:$0xff]
    %v110 = vld [vmem:[#allocation7 + $0x120] sm:$0xff]
    %v111 = vld [vmem:[#allocation7 + $0x128] sm:$0xff]
    %v112 = vld [vmem:[#allocation7 + $0x130] sm:$0xff]
    %v113 = vld [vmem:[#allocation7 + $0x138] sm:$0xff]
    %v114 = vld [vmem:[#allocation7 + $0x140] sm:$0xff]
    %v115 = vld [vmem:[#allocation7 + $0x148] sm:$0xff]
    %v116 = vld [vmem:[#allocation7 + $0x150] sm:$0xff]
    %v117 = vld [vmem:[#allocation7 + $0x158] sm:$0xff]
    %v118 = vld [vmem:[#allocation7 + $0x160] sm:$0xff]
    %v119 = vld [vmem:[#allocation7 + $0x168] sm:$0xff]
    %v120 = vld [vmem:[#allocation7 + $0x170] sm:$0xff]
    %v121 = vld [vmem:[#allocation7 + $0x178] sm:$0xff]
    %v122 = vld [vmem:[#allocation7 + $0x180] sm:$0xff]
    %v123 = vld [vmem:[#allocation7 + $0x188] sm:$0xff]
    %v124 = vld [vmem:[#allocation7 + $0x190] sm:$0xff]
    %v125 = vld [vmem:[#allocation7 + $0x198] sm:$0xff]
    %v126 = vld [vmem:[#allocation7 + $0x1a0] sm:$0xff]
    %v127 = vld [vmem:[#allocation7 + $0x1a8] sm:$0xff]
    %v128 = vld [vmem:[#allocation7 + $0x1b0] sm:$0xff]
    %v129 = vld [vmem:[#allocation7 + $0x1b8] sm:$0xff]
    %v130 = vld [vmem:[#allocation7 + $0x1c0] sm:$0xff]
    %v131 = vld [vmem:[#allocation7 + $0x1c8] sm:$0xff]
    %v132 = vld [vmem:[#allocation7 + $0x1d0] sm:$0xff]
    %v133 = vld [vmem:[#allocation7 + $0x1d8] sm:$0xff]
    %v134 = vld [vmem:[#allocation7 + $0x1e0] sm:$0xff]
    %v135 = vld [vmem:[#allocation7 + $0x1e8] sm:$0xff]
    %v136 = vld [vmem:[#allocation7 + $0x1f0] sm:$0xff]
    %v137 = vld [vmem:[#allocation7 + $0x1f8] sm:$0xff]
    %v138 = vld [vmem:[#allocation2] sm:$0x3]
    %v139 = vld [vmem:[#allocation3] sm:$0x3]
    %v140 = vld [vmem:[#allocation4] sm:$0xff]
    %141 = vmatpush.msra.mxu0 %v134
    %142 = vmatpush.msra.mxu0 %v130
    %143 = vmatpush.msra.mxu0 %v126
    %144 = vmatpush.msra.mxu0 %v122
    %145 = vmatpush.msra.mxu0 %v118
    %146 = vmatpush.msra.mxu0 %v114
    %147 = vmatpush.msra.mxu0 %v110
    %148 = vmatpush.msra.mxu0 %v106
    %149 = vmatpush.msra.mxu0 %v102
    %150 = vmatpush.msra.mxu0 %v98
    %151 = vmatpush.msra.mxu0 %v94
    %152 = vmatpush.msra.mxu0 %v90
    %153 = vmatpush.msra.mxu0 %v86
    %154 = vmatpush.msra.mxu0 %v82
    %155 = vmatpush.msra.mxu0 %v78
    %156 = vmatpush.msra.mxu0 %v74
    %157 = vmatmul.f32.gmra.mxu0 %v138
    %v158 = vpop.f32.mrf.mxu0
    %v159 = vadd.f32 0.0, %v158
    %160 = vdwg.mxu0
    %161 = vmatpush.msra.mxu0 %v135
    %162 = vmatpush.msra.mxu0 %v131
    %163 = vmatpush.msra.mxu0 %v127
    %164 = vmatpush.msra.mxu0 %v123
    %165 = vmatpush.msra.mxu0 %v119
    %166 = vmatpush.msra.mxu0 %v115
    %167 = vmatpush.msra.mxu0 %v111
    %168 = vmatpush.msra.mxu0 %v107
    %169 = vmatpush.msra.mxu0 %v103
    %170 = vmatpush.msra.mxu0 %v99
    %171 = vmatpush.msra.mxu0 %v95
    %172 = vmatpush.msra.mxu0 %v91
    %173 = vmatpush.msra.mxu0 %v87
    %174 = vmatpush.msra.mxu0 %v83
    %175 = vmatpush.msra.mxu0 %v79
    %176 = vmatpush.msra.mxu0 %v75
    %177 = vmatmul.f32.gmra.mxu0 %v138
    %v178 = vpop.f32.mrf.mxu0
    %v179 = vadd.f32 0.0, %v178
    %180 = vdwg.mxu0
    %181 = vmatpush.msra.mxu0 %v136
    %182 = vmatpush.msra.mxu0 %v132
    %183 = vmatpush.msra.mxu0 %v128
    %184 = vmatpush.msra.mxu0 %v124
    %185 = vmatpush.msra.mxu0 %v120
    %186 = vmatpush.msra.mxu0 %v116
    %187 = vmatpush.msra.mxu0 %v112
    %188 = vmatpush.msra.mxu0 %v108
    %189 = vmatpush.msra.mxu0 %v104
    %190 = vmatpush.msra.mxu0 %v100
    %191 = vmatpush.msra.mxu0 %v96
    %192 = vmatpush.msra.mxu0 %v92
    %193 = vmatpush.msra.mxu0 %v88
    %194 = vmatpush.msra.mxu0 %v84
    %195 = vmatpush.msra.mxu0 %v80
    %196 = vmatpush.msra.mxu0 %v76
    %197 = vmatmul.f32.gmra.mxu0 %v138
    %v198 = vpop.f32.mrf.mxu0
    %v199 = vadd.f32 0.0, %v198
    %200 = vdwg.mxu0
    %201 = vmatpush.msra.mxu0 %v137
    %202 = vmatpush.msra.mxu0 %v133
    %203 = vmatpush.msra.mxu0 %v129
    %204 = vmatpush.msra.mxu0 %v125
    %205 = vmatpush.msra.mxu0 %v121
    %206 = vmatpush.msra.mxu0 %v117
    %207 = vmatpush.msra.mxu0 %v113
    %208 = vmatpush.msra.mxu0 %v109
    %209 = vmatpush.msra.mxu0 %v105
    %210 = vmatpush.msra.mxu0 %v101
    %211 = vmatpush.msra.mxu0 %v97
    %212 = vmatpush.msra.mxu0 %v93
    %213 = vmatpush.msra.mxu0 %v89
    %214 = vmatpush.msra.mxu0 %v85
    %215 = vmatpush.msra.mxu0 %v81
    %216 = vmatpush.msra.mxu0 %v77
    %217 = vmatmul.f32.gmra.mxu0 %v138
    %v218 = vpop.f32.mrf.mxu0
    %v219 = vadd.f32 0.0, %v218
    %220 = vdwg.mxu0
    %v225 = vrot.slane %v179, 6
    %v226 = vrot.slane %v199, 4
    %v227 = vrot.slane %v219, 2
    %vm228 = vcmask 1041408
    %v229 = vsel %vm228, %v159, %v225
    %vm230 = vcmask 1045508
    %v231 = vsel %vm230, %v226, %v227
    %vm232 = vcmask 1043456
    %v233 = vsel %vm232, %v229, %v231
    %v235 = vadd.f32 %v140, %v233
    %v236 = vxor.u32 %v235, 2147483648
    %v237 = vmul.f32 %v236, 1.442695
    %v238 = vpow.pop %v237
    %v239 = vadd.f32 %v238, 1.0
    %v240 = vrcp.pop %v239
    %v241 = vmul.f32 %v239, %v240
    %v242 = vsub.f32 1.0, %v241
    %v243 = vmul.f32 %v240, %v242
    %v244 = vadd.f32 %v240, %v243
    %vm245 = vweird.f32 %v239
    %vm246 = vweird.f32 %v240
    %vm247 = vmor %vm245, %vm246
    %v248 = vsel %vm247, %v240, %v244
    %v249 = vand.u32 2147483647, %v239
    %vm250 = vcmp.eq.f32.partialorder %v249, 8.507059e+37
    %v251 = vand.u32 %v239, 2147483648
    %v252 = vor.u32 1.1754944e-38, %v251
    %v253 = vsel %vm250, %v252, %v248
    %v254 = vmul.f32 1.0, %v253
    %v256 = vrot.slane %v235, 2
    %v258 = vxor.u32 %v256, 2147483648
    %v259 = vmul.f32 %v258, 1.442695
    %v260 = vpow.pop %v259
    %v261 = vadd.f32 %v260, 1.0
    %v262 = vrcp.pop %v261
    %v263 = vmul.f32 %v261, %v262
    %v264 = vsub.f32 1.0, %v263
    %v265 = vmul.f32 %v262, %v264
    %v266 = vadd.f32 %v262, %v265
    %vm267 = vweird.f32 %v261
    %vm268 = vweird.f32 %v262
    %vm269 = vmor %vm267, %vm268
    %v270 = vsel %vm269, %v262, %v266
    %v271 = vand.u32 2147483647, %v261
    %vm272 = vcmp.eq.f32.partialorder %v271, 8.507059e+37
    %v273 = vand.u32 %v261, 2147483648
    %v274 = vor.u32 1.1754944e-38, %v273
    %v275 = vsel %vm272, %v274, %v270
    %v276 = vmul.f32 1.0, %v275
    %v277 = vrot.slane %v235, 4
    %v279 = vtanh.pop %v277
    %v280 = vrot.slane %v235, 6
    %v282 = vxor.u32 %v280, 2147483648
    %v283 = vmul.f32 %v282, 1.442695
    %v284 = vpow.pop %v283
    %v285 = vadd.f32 %v284, 1.0
    %v286 = vrcp.pop %v285
    %v287 = vmul.f32 %v285, %v286
    %v288 = vsub.f32 1.0, %v287
    %v289 = vmul.f32 %v286, %v288
    %v290 = vadd.f32 %v286, %v289
    %vm291 = vweird.f32 %v285
    %vm292 = vweird.f32 %v286
    %vm293 = vmor %vm291, %vm292
    %v294 = vsel %vm293, %v286, %v290
    %v295 = vand.u32 2147483647, %v285
    %vm296 = vcmp.eq.f32.partialorder %v295, 8.507059e+37
    %v297 = vand.u32 %v285, 2147483648
    %v298 = vor.u32 1.1754944e-38, %v297
    %v299 = vsel %vm296, %v298, %v294
    %v300 = vmul.f32 1.0, %v299
    %v301 = vmul.f32 %v276, %v139
    %v302 = vmul.f32 %v254, %v279
    %v303 = vadd.f32 %v301, %v302
    %v304 = vtanh.pop %v303
    %v305 = vmul.f32 %v300, %v304
    %306 = vst [vmem:[#allocation10] sm:$0x3] %v305
    %s307 = scalar_lea.vmem [#allocation4], 8
    %v308 = vld [vmem:[%s307] sm:$0xff]
    %309 = vmatpush.msra.mxu0 %v134
    %310 = vmatpush.msra.mxu0 %v130
    %311 = vmatpush.msra.mxu0 %v126
    %312 = vmatpush.msra.mxu0 %v122
    %313 = vmatpush.msra.mxu0 %v118
    %314 = vmatpush.msra.mxu0 %v114
    %315 = vmatpush.msra.mxu0 %v110
    %316 = vmatpush.msra.mxu0 %v106
    %317 = vmatpush.msra.mxu0 %v102
    %318 = vmatpush.msra.mxu0 %v98
    %319 = vmatpush.msra.mxu0 %v94
    %320 = vmatpush.msra.mxu0 %v90
    %321 = vmatpush.msra.mxu0 %v86
    %322 = vmatpush.msra.mxu0 %v82
    %323 = vmatpush.msra.mxu0 %v78
    %324 = vmatpush.msra.mxu0 %v74
    %325 = vmatmul.f32.gmra.mxu0 %v305
    %v326 = vpop.f32.mrf.mxu0
    %v327 = vadd.f32 0.0, %v326
    %328 = vdwg.mxu0
    %329 = vmatpush.msra.mxu0 %v135
    %330 = vmatpush.msra.mxu0 %v131
    %331 = vmatpush.msra.mxu0 %v127
    %332 = vmatpush.msra.mxu0 %v123
    %333 = vmatpush.msra.mxu0 %v119
    %334 = vmatpush.msra.mxu0 %v115
    %335 = vmatpush.msra.mxu0 %v111
    %336 = vmatpush.msra.mxu0 %v107
    %337 = vmatpush.msra.mxu0 %v103
    %338 = vmatpush.msra.mxu0 %v99
    %339 = vmatpush.msra.mxu0 %v95
    %340 = vmatpush.msra.mxu0 %v91
    %341 = vmatpush.msra.mxu0 %v87
    %342 = vmatpush.msra.mxu0 %v83
    %343 = vmatpush.msra.mxu0 %v79
    %344 = vmatpush.msra.mxu0 %v75
    %345 = vmatmul.f32.gmra.mxu0 %v305
    %v346 = vpop.f32.mrf.mxu0
    %v347 = vadd.f32 0.0, %v346
    %348 = vdwg.mxu0
    %349 = vmatpush.msra.mxu0 %v136
    %350 = vmatpush.msra.mxu0 %v132
    %351 = vmatpush.msra.mxu0 %v128
    %352 = vmatpush.msra.mxu0 %v124
    %353 = vmatpush.msra.mxu0 %v120
    %354 = vmatpush.msra.mxu0 %v116
    %355 = vmatpush.msra.mxu0 %v112
    %356 = vmatpush.msra.mxu0 %v108
    %357 = vmatpush.msra.mxu0 %v104
    %358 = vmatpush.msra.mxu0 %v100
    %359 = vmatpush.msra.mxu0 %v96
    %360 = vmatpush.msra.mxu0 %v92
    %361 = vmatpush.msra.mxu0 %v88
    %362 = vmatpush.msra.mxu0 %v84
    %363 = vmatpush.msra.mxu0 %v80
    %364 = vmatpush.msra.mxu0 %v76
    %365 = vmatmul.f32.gmra.mxu0 %v305
    %v366 = vpop.f32.mrf.mxu0
    %v367 = vadd.f32 0.0, %v366
    %368 = vdwg.mxu0
    %369 = vmatpush.msra.mxu0 %v137
    %370 = vmatpush.msra.mxu0 %v133
    %371 = vmatpush.msra.mxu0 %v129
    %372 = vmatpush.msra.mxu0 %v125
    %373 = vmatpush.msra.mxu0 %v121
    %374 = vmatpush.msra.mxu0 %v117
    %375 = vmatpush.msra.mxu0 %v113
    %376 = vmatpush.msra.mxu0 %v109
    %377 = vmatpush.msra.mxu0 %v105
    %378 = vmatpush.msra.mxu0 %v101
    %379 = vmatpush.msra.mxu0 %v97
    %380 = vmatpush.msra.mxu0 %v93
    %381 = vmatpush.msra.mxu0 %v89
    %382 = vmatpush.msra.mxu0 %v85
    %383 = vmatpush.msra.mxu0 %v81
    %384 = vmatpush.msra.mxu0 %v77
    %385 = vmatmul.f32.gmra.mxu0 %v305
    %v386 = vpop.f32.mrf.mxu0
    %v387 = vadd.f32 0.0, %v386
    %388 = vdwg.mxu0
    %v393 = vrot.slane %v347, 6
    %v394 = vrot.slane %v367, 4
    %v395 = vrot.slane %v387, 2
    %v396 = vsel %vm228, %v327, %v393
    %v397 = vsel %vm230, %v394, %v395
    %v398 = vsel %vm232, %v396, %v397
    %v400 = vadd.f32 %v308, %v398
    %v401 = vxor.u32 %v400, 2147483648
    %v402 = vmul.f32 %v401, 1.442695
    %v403 = vpow.pop %v402
    %v404 = vadd.f32 %v403, 1.0
    %v405 = vrcp.pop %v404
    %v406 = vmul.f32 %v404, %v405
    %v407 = vsub.f32 1.0, %v406
    %v408 = vmul.f32 %v405, %v407
    %v409 = vadd.f32 %v405, %v408
    %vm410 = vweird.f32 %v404
    %vm411 = vweird.f32 %v405
    %vm412 = vmor %vm410, %vm411
    %v413 = vsel %vm412, %v405, %v409
    %v414 = vand.u32 2147483647, %v404
    %vm415 = vcmp.eq.f32.partialorder %v414, 8.507059e+37
    %v416 = vand.u32 %v404, 2147483648
    %v417 = vor.u32 1.1754944e-38, %v416
    %v418 = vsel %vm415, %v417, %v413
    %v419 = vmul.f32 1.0, %v418
    %v421 = vrot.slane %v400, 2
    %v423 = vxor.u32 %v421, 2147483648
    %v424 = vmul.f32 %v423, 1.442695
    %v425 = vpow.pop %v424
    %v426 = vadd.f32 %v425, 1.0
    %v427 = vrcp.pop %v426
    %v428 = vmul.f32 %v426, %v427
    %v429 = vsub.f32 1.0, %v428
    %v430 = vmul.f32 %v427, %v429
    %v431 = vadd.f32 %v427, %v430
    %vm432 = vweird.f32 %v426
    %vm433 = vweird.f32 %v427
    %vm434 = vmor %vm432, %vm433
    %v435 = vsel %vm434, %v427, %v431
    %v436 = vand.u32 2147483647, %v426
    %vm437 = vcmp.eq.f32.partialorder %v436, 8.507059e+37
    %v438 = vand.u32 %v426, 2147483648
    %v439 = vor.u32 1.1754944e-38, %v438
    %v440 = vsel %vm437, %v439, %v435
    %v441 = vmul.f32 1.0, %v440
    %v442 = vrot.slane %v400, 4
    %v444 = vtanh.pop %v442
    %v445 = vrot.slane %v400, 6
    %v447 = vxor.u32 %v445, 2147483648
    %v448 = vmul.f32 %v447, 1.442695
    %v449 = vpow.pop %v448
    %v450 = vadd.f32 %v449, 1.0
    %v451 = vrcp.pop %v450
    %v452 = vmul.f32 %v450, %v451
    %v453 = vsub.f32 1.0, %v452
    %v454 = vmul.f32 %v451, %v453
    %v455 = vadd.f32 %v451, %v454
    %vm456 = vweird.f32 %v450
    %vm457 = vweird.f32 %v451
    %vm458 = vmor %vm456, %vm457
    %v459 = vsel %vm458, %v451, %v455
    %v460 = vand.u32 2147483647, %v450
    %vm461 = vcmp.eq.f32.partialorder %v460, 8.507059e+37
    %v462 = vand.u32 %v450, 2147483648
    %v463 = vor.u32 1.1754944e-38, %v462
    %v464 = vsel %vm461, %v463, %v459
    %v465 = vmul.f32 1.0, %v464
    %v466 = vmul.f32 %v441, %v303
    %v467 = vmul.f32 %v419, %v444
    %v468 = vadd.f32 %v466, %v467
    %v469 = vtanh.pop %v468
    %v470 = vmul.f32 %v465, %v469
    %s471 = scalar_lea.vmem [#allocation10], 2
    %472 = vst [vmem:[%s471] sm:$0x3] %v470
    %s473 = scalar_lea.vmem [#allocation4], 16
    %v474 = vld [vmem:[%s473] sm:$0xff]
    %475 = vmatpush.msra.mxu0 %v134
    %476 = vmatpush.msra.mxu0 %v130
    %477 = vmatpush.msra.mxu0 %v126
    %478 = vmatpush.msra.mxu0 %v122
    %479 = vmatpush.msra.mxu0 %v118
    %480 = vmatpush.msra.mxu0 %v114
    %481 = vmatpush.msra.mxu0 %v110
    %482 = vmatpush.msra.mxu0 %v106
    %483 = vmatpush.msra.mxu0 %v102
    %484 = vmatpush.msra.mxu0 %v98
    %485 = vmatpush.msra.mxu0 %v94
    %486 = vmatpush.msra.mxu0 %v90
    %487 = vmatpush.msra.mxu0 %v86
    %488 = vmatpush.msra.mxu0 %v82
    %489 = vmatpush.msra.mxu0 %v78
    %490 = vmatpush.msra.mxu0 %v74
    %491 = vmatmul.f32.gmra.mxu0 %v470
    %v492 = vpop.f32.mrf.mxu0
    %v493 = vadd.f32 0.0, %v492
    %494 = vdwg.mxu0
    %495 = vmatpush.msra.mxu0 %v135
    %496 = vmatpush.msra.mxu0 %v131
    %497 = vmatpush.msra.mxu0 %v127
    %498 = vmatpush.msra.mxu0 %v123
    %499 = vmatpush.msra.mxu0 %v119
    %500 = vmatpush.msra.mxu0 %v115
    %501 = vmatpush.msra.mxu0 %v111
    %502 = vmatpush.msra.mxu0 %v107
    %503 = vmatpush.msra.mxu0 %v103
    %504 = vmatpush.msra.mxu0 %v99
    %505 = vmatpush.msra.mxu0 %v95
    %506 = vmatpush.msra.mxu0 %v91
    %507 = vmatpush.msra.mxu0 %v87
    %508 = vmatpush.msra.mxu0 %v83
    %509 = vmatpush.msra.mxu0 %v79
    %510 = vmatpush.msra.mxu0 %v75
    %511 = vmatmul.f32.gmra.mxu0 %v470
    %v512 = vpop.f32.mrf.mxu0
    %v513 = vadd.f32 0.0, %v512
    %514 = vdwg.mxu0
    %515 = vmatpush.msra.mxu0 %v136
    %516 = vmatpush.msra.mxu0 %v132
    %517 = vmatpush.msra.mxu0 %v128
    %518 = vmatpush.msra.mxu0 %v124
    %519 = vmatpush.msra.mxu0 %v120
    %520 = vmatpush.msra.mxu0 %v116
    %521 = vmatpush.msra.mxu0 %v112
    %522 = vmatpush.msra.mxu0 %v108
    %523 = vmatpush.msra.mxu0 %v104
    %524 = vmatpush.msra.mxu0 %v100
    %525 = vmatpush.msra.mxu0 %v96
    %526 = vmatpush.msra.mxu0 %v92
    %527 = vmatpush.msra.mxu0 %v88
    %528 = vmatpush.msra.mxu0 %v84
    %529 = vmatpush.msra.mxu0 %v80
    %530 = vmatpush.msra.mxu0 %v76
    %531 = vmatmul.f32.gmra.mxu0 %v470
    %v532 = vpop.f32.mrf.mxu0
    %v533 = vadd.f32 0.0, %v532
    %534 = vdwg.mxu0
    %535 = vmatpush.msra.mxu0 %v137
    %536 = vmatpush.msra.mxu0 %v133
    %537 = vmatpush.msra.mxu0 %v129
    %538 = vmatpush.msra.mxu0 %v125
    %539 = vmatpush.msra.mxu0 %v121
    %540 = vmatpush.msra.mxu0 %v117
    %541 = vmatpush.msra.mxu0 %v113
    %542 = vmatpush.msra.mxu0 %v109
    %543 = vmatpush.msra.mxu0 %v105
    %544 = vmatpush.msra.mxu0 %v101
    %545 = vmatpush.msra.mxu0 %v97
    %546 = vmatpush.msra.mxu0 %v93
    %547 = vmatpush.msra.mxu0 %v89
    %548 = vmatpush.msra.mxu0 %v85
    %549 = vmatpush.msra.mxu0 %v81
    %550 = vmatpush.msra.mxu0 %v77
    %551 = vmatmul.f32.gmra.mxu0 %v470
    %v552 = vpop.f32.mrf.mxu0
    %v553 = vadd.f32 0.0, %v552
    %554 = vdwg.mxu0
    %v559 = vrot.slane %v513, 6
    %v560 = vrot.slane %v533, 4
    %v561 = vrot.slane %v553, 2
    %v562 = vsel %vm228, %v493, %v559
    %v563 = vsel %vm230, %v560, %v561
    %v564 = vsel %vm232, %v562, %v563
    %v566 = vadd.f32 %v474, %v564
    %v567 = vxor.u32 %v566, 2147483648
    %v568 = vmul.f32 %v567, 1.442695
    %v569 = vpow.pop %v568
    %v570 = vadd.f32 %v569, 1.0
    %v571 = vrcp.pop %v570
    %v572 = vmul.f32 %v570, %v571
    %v573 = vsub.f32 1.0, %v572
    %v574 = vmul.f32 %v571, %v573
    %v575 = vadd.f32 %v571, %v574
    %vm576 = vweird.f32 %v570
    %vm577 = vweird.f32 %v571
    %vm578 = vmor %vm576, %vm577
    %v579 = vsel %vm578, %v571, %v575
    %v580 = vand.u32 2147483647, %v570
    %vm581 = vcmp.eq.f32.partialorder %v580, 8.507059e+37
    %v582 = vand.u32 %v570, 2147483648
    %v583 = vor.u32 1.1754944e-38, %v582
    %v584 = vsel %vm581, %v583, %v579
    %v585 = vmul.f32 1.0, %v584
    %v587 = vrot.slane %v566, 2
    %v589 = vxor.u32 %v587, 2147483648
    %v590 = vmul.f32 %v589, 1.442695
    %v591 = vpow.pop %v590
    %v592 = vadd.f32 %v591, 1.0
    %v593 = vrcp.pop %v592
    %v594 = vmul.f32 %v592, %v593
    %v595 = vsub.f32 1.0, %v594
    %v596 = vmul.f32 %v593, %v595
    %v597 = vadd.f32 %v593, %v596
    %vm598 = vweird.f32 %v592
    %vm599 = vweird.f32 %v593
    %vm600 = vmor %vm598, %vm599
    %v601 = vsel %vm600, %v593, %v597
    %v602 = vand.u32 2147483647, %v592
    %vm603 = vcmp.eq.f32.partialorder %v602, 8.507059e+37
    %v604 = vand.u32 %v592, 2147483648
    %v605 = vor.u32 1.1754944e-38, %v604
    %v606 = vsel %vm603, %v605, %v601
    %v607 = vmul.f32 1.0, %v606
    %v608 = vrot.slane %v566, 4
    %v610 = vtanh.pop %v608
    %v611 = vrot.slane %v566, 6
    %v613 = vxor.u32 %v611, 2147483648
    %v614 = vmul.f32 %v613, 1.442695
    %v615 = vpow.pop %v614
    %v616 = vadd.f32 %v615, 1.0
    %v617 = vrcp.pop %v616
    %v618 = vmul.f32 %v616, %v617
    %v619 = vsub.f32 1.0, %v618
    %v620 = vmul.f32 %v617, %v619
    %v621 = vadd.f32 %v617, %v620
    %vm622 = vweird.f32 %v616
    %vm623 = vweird.f32 %v617
    %vm624 = vmor %vm622, %vm623
    %v625 = vsel %vm624, %v617, %v621
    %v626 = vand.u32 2147483647, %v616
    %vm627 = vcmp.eq.f32.partialorder %v626, 8.507059e+37
    %v628 = vand.u32 %v616, 2147483648
    %v629 = vor.u32 1.1754944e-38, %v628
    %v630 = vsel %vm627, %v629, %v625
    %v631 = vmul.f32 1.0, %v630
    %v632 = vmul.f32 %v607, %v468
    %v633 = vmul.f32 %v585, %v610
    %v634 = vadd.f32 %v632, %v633
    %v635 = vtanh.pop %v634
    %v636 = vmul.f32 %v631, %v635
    %s637 = scalar_lea.vmem [#allocation10], 4
    %638 = vst [vmem:[%s637] sm:$0x3] %v636
    %s639 = scalar_lea.vmem [#allocation4], 24
    %v640 = vld [vmem:[%s639] sm:$0xff]
    %641 = vmatpush.msra.mxu0 %v134
    %642 = vmatpush.msra.mxu0 %v130
    %643 = vmatpush.msra.mxu0 %v126
    %644 = vmatpush.msra.mxu0 %v122
    %645 = vmatpush.msra.mxu0 %v118
    %646 = vmatpush.msra.mxu0 %v114
    %647 = vmatpush.msra.mxu0 %v110
    %648 = vmatpush.msra.mxu0 %v106
    %649 = vmatpush.msra.mxu0 %v102
    %650 = vmatpush.msra.mxu0 %v98
    %651 = vmatpush.msra.mxu0 %v94
    %652 = vmatpush.msra.mxu0 %v90
    %653 = vmatpush.msra.mxu0 %v86
    %654 = vmatpush.msra.mxu0 %v82
    %655 = vmatpush.msra.mxu0 %v78
    %656 = vmatpush.msra.mxu0 %v74
    %657 = vmatmul.f32.gmra.mxu0 %v636
    %v658 = vpop.f32.mrf.mxu0
    %v659 = vadd.f32 0.0, %v658
    %660 = vdwg.mxu0
    %661 = vmatpush.msra.mxu0 %v135
    %662 = vmatpush.msra.mxu0 %v131
    %663 = vmatpush.msra.mxu0 %v127
    %664 = vmatpush.msra.mxu0 %v123
    %665 = vmatpush.msra.mxu0 %v119
    %666 = vmatpush.msra.mxu0 %v115
    %667 = vmatpush.msra.mxu0 %v111
    %668 = vmatpush.msra.mxu0 %v107
    %669 = vmatpush.msra.mxu0 %v103
    %670 = vmatpush.msra.mxu0 %v99
    %671 = vmatpush.msra.mxu0 %v95
    %672 = vmatpush.msra.mxu0 %v91
    %673 = vmatpush.msra.mxu0 %v87
    %674 = vmatpush.msra.mxu0 %v83
    %675 = vmatpush.msra.mxu0 %v79
    %676 = vmatpush.msra.mxu0 %v75
    %677 = vmatmul.f32.gmra.mxu0 %v636
    %v678 = vpop.f32.mrf.mxu0
    %v679 = vadd.f32 0.0, %v678
    %680 = vdwg.mxu0
    %681 = vmatpush.msra.mxu0 %v136
    %682 = vmatpush.msra.mxu0 %v132
    %683 = vmatpush.msra.mxu0 %v128
    %684 = vmatpush.msra.mxu0 %v124
    %685 = vmatpush.msra.mxu0 %v120
    %686 = vmatpush.msra.mxu0 %v116
    %687 = vmatpush.msra.mxu0 %v112
    %688 = vmatpush.msra.mxu0 %v108
    %689 = vmatpush.msra.mxu0 %v104
    %690 = vmatpush.msra.mxu0 %v100
    %691 = vmatpush.msra.mxu0 %v96
    %692 = vmatpush.msra.mxu0 %v92
    %693 = vmatpush.msra.mxu0 %v88
    %694 = vmatpush.msra.mxu0 %v84
    %695 = vmatpush.msra.mxu0 %v80
    %696 = vmatpush.msra.mxu0 %v76
    %697 = vmatmul.f32.gmra.mxu0 %v636
    %v698 = vpop.f32.mrf.mxu0
    %v699 = vadd.f32 0.0, %v698
    %700 = vdwg.mxu0
    %701 = vmatpush.msra.mxu0 %v137
    %702 = vmatpush.msra.mxu0 %v133
    %703 = vmatpush.msra.mxu0 %v129
    %704 = vmatpush.msra.mxu0 %v125
    %705 = vmatpush.msra.mxu0 %v121
    %706 = vmatpush.msra.mxu0 %v117
    %707 = vmatpush.msra.mxu0 %v113
    %708 = vmatpush.msra.mxu0 %v109
    %709 = vmatpush.msra.mxu0 %v105
    %710 = vmatpush.msra.mxu0 %v101
    %711 = vmatpush.msra.mxu0 %v97
    %712 = vmatpush.msra.mxu0 %v93
    %713 = vmatpush.msra.mxu0 %v89
    %714 = vmatpush.msra.mxu0 %v85
    %715 = vmatpush.msra.mxu0 %v81
    %716 = vmatpush.msra.mxu0 %v77
    %717 = vmatmul.f32.gmra.mxu0 %v636
    %v718 = vpop.f32.mrf.mxu0
    %v719 = vadd.f32 0.0, %v718
    %720 = vdwg.mxu0
    %v725 = vrot.slane %v679, 6
    %v726 = vrot.slane %v699, 4
    %v727 = vrot.slane %v719, 2
    %v728 = vsel %vm228, %v659, %v725
    %v729 = vsel %vm230, %v726, %v727
    %v730 = vsel %vm232, %v728, %v729
    %v732 = vadd.f32 %v640, %v730
    %v733 = vxor.u32 %v732, 2147483648
    %v734 = vmul.f32 %v733, 1.442695
    %v735 = vpow.pop %v734
    %v736 = vadd.f32 %v735, 1.0
    %v737 = vrcp.pop %v736
    %v738 = vmul.f32 %v736, %v737
    %v739 = vsub.f32 1.0, %v738
    %v740 = vmul.f32 %v737, %v739
    %v741 = vadd.f32 %v737, %v740
    %vm742 = vweird.f32 %v736
    %vm743 = vweird.f32 %v737
    %vm744 = vmor %vm742, %vm743
    %v745 = vsel %vm744, %v737, %v741
    %v746 = vand.u32 2147483647, %v736
    %vm747 = vcmp.eq.f32.partialorder %v746, 8.507059e+37
    %v748 = vand.u32 %v736, 2147483648
    %v749 = vor.u32 1.1754944e-38, %v748
    %v750 = vsel %vm747, %v749, %v745
    %v751 = vmul.f32 1.0, %v750
    %v753 = vrot.slane %v732, 2
    %v755 = vxor.u32 %v753, 2147483648
    %v756 = vmul.f32 %v755, 1.442695
    %v757 = vpow.pop %v756
    %v758 = vadd.f32 %v757, 1.0
    %v759 = vrcp.pop %v758
    %v760 = vmul.f32 %v758, %v759
    %v761 = vsub.f32 1.0, %v760
    %v762 = vmul.f32 %v759, %v761
    %v763 = vadd.f32 %v759, %v762
    %vm764 = vweird.f32 %v758
    %vm765 = vweird.f32 %v759
    %vm766 = vmor %vm764, %vm765
    %v767 = vsel %vm766, %v759, %v763
    %v768 = vand.u32 2147483647, %v758
    %vm769 = vcmp.eq.f32.partialorder %v768, 8.507059e+37
    %v770 = vand.u32 %v758, 2147483648
    %v771 = vor.u32 1.1754944e-38, %v770
    %v772 = vsel %vm769, %v771, %v767
    %v773 = vmul.f32 1.0, %v772
    %v774 = vrot.slane %v732, 4
    %v776 = vtanh.pop %v774
    %v777 = vrot.slane %v732, 6
    %v779 = vxor.u32 %v777, 2147483648
    %v780 = vmul.f32 %v779, 1.442695
    %v781 = vpow.pop %v780
    %v782 = vadd.f32 %v781, 1.0
    %v783 = vrcp.pop %v782
    %v784 = vmul.f32 %v782, %v783
    %v785 = vsub.f32 1.0, %v784
    %v786 = vmul.f32 %v783, %v785
    %v787 = vadd.f32 %v783, %v786
    %vm788 = vweird.f32 %v782
    %vm789 = vweird.f32 %v783
    %vm790 = vmor %vm788, %vm789
    %v791 = vsel %vm790, %v783, %v787
    %v792 = vand.u32 2147483647, %v782
    %vm793 = vcmp.eq.f32.partialorder %v792, 8.507059e+37
    %v794 = vand.u32 %v782, 2147483648
    %v795 = vor.u32 1.1754944e-38, %v794
    %v796 = vsel %vm793, %v795, %v791
    %v797 = vmul.f32 1.0, %v796
    %v798 = vmul.f32 %v773, %v634
    %v799 = vmul.f32 %v751, %v776
    %v800 = vadd.f32 %v798, %v799
    %v801 = vtanh.pop %v800
    %v802 = vmul.f32 %v797, %v801
    %s803 = scalar_lea.vmem [#allocation10], 6
    %804 = vst [vmem:[%s803] sm:$0x3] %v802
    %s805 = scalar_lea.vmem [#allocation4], 32
    %v806 = vld [vmem:[%s805] sm:$0xff]
    %807 = vmatpush.msra.mxu0 %v134
    %808 = vmatpush.msra.mxu0 %v130
    %809 = vmatpush.msra.mxu0 %v126
    %810 = vmatpush.msra.mxu0 %v122
    %811 = vmatpush.msra.mxu0 %v118
    %812 = vmatpush.msra.mxu0 %v114
    %813 = vmatpush.msra.mxu0 %v110
    %814 = vmatpush.msra.mxu0 %v106
    %815 = vmatpush.msra.mxu0 %v102
    %816 = vmatpush.msra.mxu0 %v98
    %817 = vmatpush.msra.mxu0 %v94
    %818 = vmatpush.msra.mxu0 %v90
    %819 = vmatpush.msra.mxu0 %v86
    %820 = vmatpush.msra.mxu0 %v82
    %821 = vmatpush.msra.mxu0 %v78
    %822 = vmatpush.msra.mxu0 %v74
    %823 = vmatmul.f32.gmra.mxu0 %v802
    %v824 = vpop.f32.mrf.mxu0
    %v825 = vadd.f32 0.0, %v824
    %826 = vdwg.mxu0
    %827 = vmatpush.msra.mxu0 %v135
    %828 = vmatpush.msra.mxu0 %v131
    %829 = vmatpush.msra.mxu0 %v127
    %830 = vmatpush.msra.mxu0 %v123
    %831 = vmatpush.msra.mxu0 %v119
    %832 = vmatpush.msra.mxu0 %v115
    %833 = vmatpush.msra.mxu0 %v111
    %834 = vmatpush.msra.mxu0 %v107
    %835 = vmatpush.msra.mxu0 %v103
    %836 = vmatpush.msra.mxu0 %v99
    %837 = vmatpush.msra.mxu0 %v95
    %838 = vmatpush.msra.mxu0 %v91
    %839 = vmatpush.msra.mxu0 %v87
    %840 = vmatpush.msra.mxu0 %v83
    %841 = vmatpush.msra.mxu0 %v79
    %842 = vmatpush.msra.mxu0 %v75
    %843 = vmatmul.f32.gmra.mxu0 %v802
    %v844 = vpop.f32.mrf.mxu0
    %v845 = vadd.f32 0.0, %v844
    %846 = vdwg.mxu0
    %847 = vmatpush.msra.mxu0 %v136
    %848 = vmatpush.msra.mxu0 %v132
    %849 = vmatpush.msra.mxu0 %v128
    %850 = vmatpush.msra.mxu0 %v124
    %851 = vmatpush.msra.mxu0 %v120
    %852 = vmatpush.msra.mxu0 %v116
    %853 = vmatpush.msra.mxu0 %v112
    %854 = vmatpush.msra.mxu0 %v108
    %855 = vmatpush.msra.mxu0 %v104
    %856 = vmatpush.msra.mxu0 %v100
    %857 = vmatpush.msra.mxu0 %v96
    %858 = vmatpush.msra.mxu0 %v92
    %859 = vmatpush.msra.mxu0 %v88
    %860 = vmatpush.msra.mxu0 %v84
    %861 = vmatpush.msra.mxu0 %v80
    %862 = vmatpush.msra.mxu0 %v76
    %863 = vmatmul.f32.gmra.mxu0 %v802
    %v864 = vpop.f32.mrf.mxu0
    %v865 = vadd.f32 0.0, %v864
    %866 = vdwg.mxu0
    %867 = vmatpush.msra.mxu0 %v137
    %868 = vmatpush.msra.mxu0 %v133
    %869 = vmatpush.msra.mxu0 %v129
    %870 = vmatpush.msra.mxu0 %v125
    %871 = vmatpush.msra.mxu0 %v121
    %872 = vmatpush.msra.mxu0 %v117
    %873 = vmatpush.msra.mxu0 %v113
    %874 = vmatpush.msra.mxu0 %v109
    %875 = vmatpush.msra.mxu0 %v105
    %876 = vmatpush.msra.mxu0 %v101
    %877 = vmatpush.msra.mxu0 %v97
    %878 = vmatpush.msra.mxu0 %v93
    %879 = vmatpush.msra.mxu0 %v89
    %880 = vmatpush.msra.mxu0 %v85
    %881 = vmatpush.msra.mxu0 %v81
    %882 = vmatpush.msra.mxu0 %v77
    %883 = vmatmul.f32.gmra.mxu0 %v802
    %v884 = vpop.f32.mrf.mxu0
    %v885 = vadd.f32 0.0, %v884
    %886 = vdwg.mxu0
    %v891 = vrot.slane %v845, 6
    %v892 = vrot.slane %v865, 4
    %v893 = vrot.slane %v885, 2
    %v894 = vsel %vm228, %v825, %v891
    %v895 = vsel %vm230, %v892, %v893
    %v896 = vsel %vm232, %v894, %v895
    %v898 = vadd.f32 %v806, %v896
    %v899 = vxor.u32 %v898, 2147483648
    %v900 = vmul.f32 %v899, 1.442695
    %v901 = vpow.pop %v900
    %v902 = vadd.f32 %v901, 1.0
    %v903 = vrcp.pop %v902
    %v904 = vmul.f32 %v902, %v903
    %v905 = vsub.f32 1.0, %v904
    %v906 = vmul.f32 %v903, %v905
    %v907 = vadd.f32 %v903, %v906
    %vm908 = vweird.f32 %v902
    %vm909 = vweird.f32 %v903
    %vm910 = vmor %vm908, %vm909
    %v911 = vsel %vm910, %v903, %v907
    %v912 = vand.u32 2147483647, %v902
    %vm913 = vcmp.eq.f32.partialorder %v912, 8.507059e+37
    %v914 = vand.u32 %v902, 2147483648
    %v915 = vor.u32 1.1754944e-38, %v914
    %v916 = vsel %vm913, %v915, %v911
    %v917 = vmul.f32 1.0, %v916
    %v919 = vrot.slane %v898, 2
    %v921 = vxor.u32 %v919, 2147483648
    %v922 = vmul.f32 %v921, 1.442695
    %v923 = vpow.pop %v922
    %v924 = vadd.f32 %v923, 1.0
    %v925 = vrcp.pop %v924
    %v926 = vmul.f32 %v924, %v925
    %v927 = vsub.f32 1.0, %v926
    %v928 = vmul.f32 %v925, %v927
    %v929 = vadd.f32 %v925, %v928
    %vm930 = vweird.f32 %v924
    %vm931 = vweird.f32 %v925
    %vm932 = vmor %vm930, %vm931
    %v933 = vsel %vm932, %v925, %v929
    %v934 = vand.u32 2147483647, %v924
    %vm935 = vcmp.eq.f32.partialorder %v934, 8.507059e+37
    %v936 = vand.u32 %v924, 2147483648
    %v937 = vor.u32 1.1754944e-38, %v936
    %v938 = vsel %vm935, %v937, %v933
    %v939 = vmul.f32 1.0, %v938
    %v940 = vrot.slane %v898, 4
    %v942 = vtanh.pop %v940
    %v943 = vrot.slane %v898, 6
    %v945 = vxor.u32 %v943, 2147483648
    %v946 = vmul.f32 %v945, 1.442695
    %v947 = vpow.pop %v946
    %v948 = vadd.f32 %v947, 1.0
    %v949 = vrcp.pop %v948
    %v950 = vmul.f32 %v948, %v949
    %v951 = vsub.f32 1.0, %v950
    %v952 = vmul.f32 %v949, %v951
    %v953 = vadd.f32 %v949, %v952
    %vm954 = vweird.f32 %v948
    %vm955 = vweird.f32 %v949
    %vm956 = vmor %vm954, %vm955
    %v957 = vsel %vm956, %v949, %v953
    %v958 = vand.u32 2147483647, %v948
    %vm959 = vcmp.eq.f32.partialorder %v958, 8.507059e+37
    %v960 = vand.u32 %v948, 2147483648
    %v961 = vor.u32 1.1754944e-38, %v960
    %v962 = vsel %vm959, %v961, %v957
    %v963 = vmul.f32 1.0, %v962
    %v964 = vmul.f32 %v939, %v800
    %v965 = vmul.f32 %v917, %v942
    %v966 = vadd.f32 %v964, %v965
    %v967 = vtanh.pop %v966
    %v968 = vmul.f32 %v963, %v967
    %s969 = scalar_lea.vmem [#allocation10], 8
    %970 = vst [vmem:[%s969] sm:$0x3] %v968
    %s971 = scalar_lea.vmem [#allocation4], 40
    %v972 = vld [vmem:[%s971] sm:$0xff]
    %973 = vmatpush.msra.mxu0 %v134
    %974 = vmatpush.msra.mxu0 %v130
    %975 = vmatpush.msra.mxu0 %v126
    %976 = vmatpush.msra.mxu0 %v122
    %977 = vmatpush.msra.mxu0 %v118
    %978 = vmatpush.msra.mxu0 %v114
    %979 = vmatpush.msra.mxu0 %v110
    %980 = vmatpush.msra.mxu0 %v106
    %981 = vmatpush.msra.mxu0 %v102
    %982 = vmatpush.msra.mxu0 %v98
    %983 = vmatpush.msra.mxu0 %v94
    %984 = vmatpush.msra.mxu0 %v90
    %985 = vmatpush.msra.mxu0 %v86
    %986 = vmatpush.msra.mxu0 %v82
    %987 = vmatpush.msra.mxu0 %v78
    %988 = vmatpush.msra.mxu0 %v74
    %989 = vmatmul.f32.gmra.mxu0 %v968
    %v990 = vpop.f32.mrf.mxu0
    %v991 = vadd.f32 0.0, %v990
    %992 = vdwg.mxu0
    %993 = vmatpush.msra.mxu0 %v135
    %994 = vmatpush.msra.mxu0 %v131
    %995 = vmatpush.msra.mxu0 %v127
    %996 = vmatpush.msra.mxu0 %v123
    %997 = vmatpush.msra.mxu0 %v119
    %998 = vmatpush.msra.mxu0 %v115
    %999 = vmatpush.msra.mxu0 %v111
    %1000 = vmatpush.msra.mxu0 %v107
    %1001 = vmatpush.msra.mxu0 %v103
    %1002 = vmatpush.msra.mxu0 %v99
    %1003 = vmatpush.msra.mxu0 %v95
    %1004 = vmatpush.msra.mxu0 %v91
    %1005 = vmatpush.msra.mxu0 %v87
    %1006 = vmatpush.msra.mxu0 %v83
    %1007 = vmatpush.msra.mxu0 %v79
    %1008 = vmatpush.msra.mxu0 %v75
    %1009 = vmatmul.f32.gmra.mxu0 %v968
    %v1010 = vpop.f32.mrf.mxu0
    %v1011 = vadd.f32 0.0, %v1010
    %1012 = vdwg.mxu0
    %1013 = vmatpush.msra.mxu0 %v136
    %1014 = vmatpush.msra.mxu0 %v132
    %1015 = vmatpush.msra.mxu0 %v128
    %1016 = vmatpush.msra.mxu0 %v124
    %1017 = vmatpush.msra.mxu0 %v120
    %1018 = vmatpush.msra.mxu0 %v116
    %1019 = vmatpush.msra.mxu0 %v112
    %1020 = vmatpush.msra.mxu0 %v108
    %1021 = vmatpush.msra.mxu0 %v104
    %1022 = vmatpush.msra.mxu0 %v100
    %1023 = vmatpush.msra.mxu0 %v96
    %1024 = vmatpush.msra.mxu0 %v92
    %1025 = vmatpush.msra.mxu0 %v88
    %1026 = vmatpush.msra.mxu0 %v84
    %1027 = vmatpush.msra.mxu0 %v80
    %1028 = vmatpush.msra.mxu0 %v76
    %1029 = vmatmul.f32.gmra.mxu0 %v968
    %v1030 = vpop.f32.mrf.mxu0
    %v1031 = vadd.f32 0.0, %v1030
    %1032 = vdwg.mxu0
    %1033 = vmatpush.msra.mxu0 %v137
    %1034 = vmatpush.msra.mxu0 %v133
    %1035 = vmatpush.msra.mxu0 %v129
    %1036 = vmatpush.msra.mxu0 %v125
    %1037 = vmatpush.msra.mxu0 %v121
    %1038 = vmatpush.msra.mxu0 %v117
    %1039 = vmatpush.msra.mxu0 %v113
    %1040 = vmatpush.msra.mxu0 %v109
    %1041 = vmatpush.msra.mxu0 %v105
    %1042 = vmatpush.msra.mxu0 %v101
    %1043 = vmatpush.msra.mxu0 %v97
    %1044 = vmatpush.msra.mxu0 %v93
    %1045 = vmatpush.msra.mxu0 %v89
    %1046 = vmatpush.msra.mxu0 %v85
    %1047 = vmatpush.msra.mxu0 %v81
    %1048 = vmatpush.msra.mxu0 %v77
    %1049 = vmatmul.f32.gmra.mxu0 %v968
    %v1050 = vpop.f32.mrf.mxu0
    %v1051 = vadd.f32 0.0, %v1050
    %1052 = vdwg.mxu0
    %v1057 = vrot.slane %v1011, 6
    %v1058 = vrot.slane %v1031, 4
    %v1059 = vrot.slane %v1051, 2
    %v1060 = vsel %vm228, %v991, %v1057
    %v1061 = vsel %vm230, %v1058, %v1059
    %v1062 = vsel %vm232, %v1060, %v1061
    %v1064 = vadd.f32 %v972, %v1062
    %v1065 = vxor.u32 %v1064, 2147483648
    %v1066 = vmul.f32 %v1065, 1.442695
    %v1067 = vpow.pop %v1066
    %v1068 = vadd.f32 %v1067, 1.0
    %v1069 = vrcp.pop %v1068
    %v1070 = vmul.f32 %v1068, %v1069
    %v1071 = vsub.f32 1.0, %v1070
    %v1072 = vmul.f32 %v1069, %v1071
    %v1073 = vadd.f32 %v1069, %v1072
    %vm1074 = vweird.f32 %v1068
    %vm1075 = vweird.f32 %v1069
    %vm1076 = vmor %vm1074, %vm1075
    %v1077 = vsel %vm1076, %v1069, %v1073
    %v1078 = vand.u32 2147483647, %v1068
    %vm1079 = vcmp.eq.f32.partialorder %v1078, 8.507059e+37
    %v1080 = vand.u32 %v1068, 2147483648
    %v1081 = vor.u32 1.1754944e-38, %v1080
    %v1082 = vsel %vm1079, %v1081, %v1077
    %v1083 = vmul.f32 1.0, %v1082
    %v1085 = vrot.slane %v1064, 2
    %v1087 = vxor.u32 %v1085, 2147483648
    %v1088 = vmul.f32 %v1087, 1.442695
    %v1089 = vpow.pop %v1088
    %v1090 = vadd.f32 %v1089, 1.0
    %v1091 = vrcp.pop %v1090
    %v1092 = vmul.f32 %v1090, %v1091
    %v1093 = vsub.f32 1.0, %v1092
    %v1094 = vmul.f32 %v1091, %v1093
    %v1095 = vadd.f32 %v1091, %v1094
    %vm1096 = vweird.f32 %v1090
    %vm1097 = vweird.f32 %v1091
    %vm1098 = vmor %vm1096, %vm1097
    %v1099 = vsel %vm1098, %v1091, %v1095
    %v1100 = vand.u32 2147483647, %v1090
    %vm1101 = vcmp.eq.f32.partialorder %v1100, 8.507059e+37
    %v1102 = vand.u32 %v1090, 2147483648
    %v1103 = vor.u32 1.1754944e-38, %v1102
    %v1104 = vsel %vm1101, %v1103, %v1099
    %v1105 = vmul.f32 1.0, %v1104
    %v1106 = vrot.slane %v1064, 4
    %v1108 = vtanh.pop %v1106
    %v1109 = vrot.slane %v1064, 6
    %v1111 = vxor.u32 %v1109, 2147483648
    %v1112 = vmul.f32 %v1111, 1.442695
    %v1113 = vpow.pop %v1112
    %v1114 = vadd.f32 %v1113, 1.0
    %v1115 = vrcp.pop %v1114
    %v1116 = vmul.f32 %v1114, %v1115
    %v1117 = vsub.f32 1.0, %v1116
    %v1118 = vmul.f32 %v1115, %v1117
    %v1119 = vadd.f32 %v1115, %v1118
    %vm1120 = vweird.f32 %v1114
    %vm1121 = vweird.f32 %v1115
    %vm1122 = vmor %vm1120, %vm1121
    %v1123 = vsel %vm1122, %v1115, %v1119
    %v1124 = vand.u32 2147483647, %v1114
    %vm1125 = vcmp.eq.f32.partialorder %v1124, 8.507059e+37
    %v1126 = vand.u32 %v1114, 2147483648
    %v1127 = vor.u32 1.1754944e-38, %v1126
    %v1128 = vsel %vm1125, %v1127, %v1123
    %v1129 = vmul.f32 1.0, %v1128
    %v1130 = vmul.f32 %v1105, %v966
    %v1131 = vmul.f32 %v1083, %v1108
    %v1132 = vadd.f32 %v1130, %v1131
    %v1133 = vtanh.pop %v1132
    %v1134 = vmul.f32 %v1129, %v1133
    %s1135 = scalar_lea.vmem [#allocation10], 10
    %1136 = vst [vmem:[%s1135] sm:$0x3] %v1134
    %s1137 = scalar_lea.vmem [#allocation4], 48
    %v1138 = vld [vmem:[%s1137] sm:$0xff]
    %1139 = vmatpush.msra.mxu0 %v134
    %1140 = vmatpush.msra.mxu0 %v130
    %1141 = vmatpush.msra.mxu0 %v126
    %1142 = vmatpush.msra.mxu0 %v122
    %1143 = vmatpush.msra.mxu0 %v118
    %1144 = vmatpush.msra.mxu0 %v114
    %1145 = vmatpush.msra.mxu0 %v110
    %1146 = vmatpush.msra.mxu0 %v106
    %1147 = vmatpush.msra.mxu0 %v102
    %1148 = vmatpush.msra.mxu0 %v98
    %1149 = vmatpush.msra.mxu0 %v94
    %1150 = vmatpush.msra.mxu0 %v90
    %1151 = vmatpush.msra.mxu0 %v86
    %1152 = vmatpush.msra.mxu0 %v82
    %1153 = vmatpush.msra.mxu0 %v78
    %1154 = vmatpush.msra.mxu0 %v74
    %1155 = vmatmul.f32.gmra.mxu0 %v1134
    %v1156 = vpop.f32.mrf.mxu0
    %v1157 = vadd.f32 0.0, %v1156
    %1158 = vdwg.mxu0
    %1159 = vmatpush.msra.mxu0 %v135
    %1160 = vmatpush.msra.mxu0 %v131
    %1161 = vmatpush.msra.mxu0 %v127
    %1162 = vmatpush.msra.mxu0 %v123
    %1163 = vmatpush.msra.mxu0 %v119
    %1164 = vmatpush.msra.mxu0 %v115
    %1165 = vmatpush.msra.mxu0 %v111
    %1166 = vmatpush.msra.mxu0 %v107
    %1167 = vmatpush.msra.mxu0 %v103
    %1168 = vmatpush.msra.mxu0 %v99
    %1169 = vmatpush.msra.mxu0 %v95
    %1170 = vmatpush.msra.mxu0 %v91
    %1171 = vmatpush.msra.mxu0 %v87
    %1172 = vmatpush.msra.mxu0 %v83
    %1173 = vmatpush.msra.mxu0 %v79
    %1174 = vmatpush.msra.mxu0 %v75
    %1175 = vmatmul.f32.gmra.mxu0 %v1134
    %v1176 = vpop.f32.mrf.mxu0
    %v1177 = vadd.f32 0.0, %v1176
    %1178 = vdwg.mxu0
    %1179 = vmatpush.msra.mxu0 %v136
    %1180 = vmatpush.msra.mxu0 %v132
    %1181 = vmatpush.msra.mxu0 %v128
    %1182 = vmatpush.msra.mxu0 %v124
    %1183 = vmatpush.msra.mxu0 %v120
    %1184 = vmatpush.msra.mxu0 %v116
    %1185 = vmatpush.msra.mxu0 %v112
    %1186 = vmatpush.msra.mxu0 %v108
    %1187 = vmatpush.msra.mxu0 %v104
    %1188 = vmatpush.msra.mxu0 %v100
    %1189 = vmatpush.msra.mxu0 %v96
    %1190 = vmatpush.msra.mxu0 %v92
    %1191 = vmatpush.msra.mxu0 %v88
    %1192 = vmatpush.msra.mxu0 %v84
    %1193 = vmatpush.msra.mxu0 %v80
    %1194 = vmatpush.msra.mxu0 %v76
    %1195 = vmatmul.f32.gmra.mxu0 %v1134
    %v1196 = vpop.f32.mrf.mxu0
    %v1197 = vadd.f32 0.0, %v1196
    %1198 = vdwg.mxu0
    %1199 = vmatpush.msra.mxu0 %v137
    %1200 = vmatpush.msra.mxu0 %v133
    %1201 = vmatpush.msra.mxu0 %v129
    %1202 = vmatpush.msra.mxu0 %v125
    %1203 = vmatpush.msra.mxu0 %v121
    %1204 = vmatpush.msra.mxu0 %v117
    %1205 = vmatpush.msra.mxu0 %v113
    %1206 = vmatpush.msra.mxu0 %v109
    %1207 = vmatpush.msra.mxu0 %v105
    %1208 = vmatpush.msra.mxu0 %v101
    %1209 = vmatpush.msra.mxu0 %v97
    %1210 = vmatpush.msra.mxu0 %v93
    %1211 = vmatpush.msra.mxu0 %v89
    %1212 = vmatpush.msra.mxu0 %v85
    %1213 = vmatpush.msra.mxu0 %v81
    %1214 = vmatpush.msra.mxu0 %v77
    %1215 = vmatmul.f32.gmra.mxu0 %v1134
    %v1216 = vpop.f32.mrf.mxu0
    %v1217 = vadd.f32 0.0, %v1216
    %1218 = vdwg.mxu0
    %v1223 = vrot.slane %v1177, 6
    %v1224 = vrot.slane %v1197, 4
    %v1225 = vrot.slane %v1217, 2
    %v1226 = vsel %vm228, %v1157, %v1223
    %v1227 = vsel %vm230, %v1224, %v1225
    %v1228 = vsel %vm232, %v1226, %v1227
    %v1230 = vadd.f32 %v1138, %v1228
    %v1231 = vxor.u32 %v1230, 2147483648
    %v1232 = vmul.f32 %v1231, 1.442695
    %v1233 = vpow.pop %v1232
    %v1234 = vadd.f32 %v1233, 1.0
    %v1235 = vrcp.pop %v1234
    %v1236 = vmul.f32 %v1234, %v1235
    %v1237 = vsub.f32 1.0, %v1236
    %v1238 = vmul.f32 %v1235, %v1237
    %v1239 = vadd.f32 %v1235, %v1238
    %vm1240 = vweird.f32 %v1234
    %vm1241 = vweird.f32 %v1235
    %vm1242 = vmor %vm1240, %vm1241
    %v1243 = vsel %vm1242, %v1235, %v1239
    %v1244 = vand.u32 2147483647, %v1234
    %vm1245 = vcmp.eq.f32.partialorder %v1244, 8.507059e+37
    %v1246 = vand.u32 %v1234, 2147483648
    %v1247 = vor.u32 1.1754944e-38, %v1246
    %v1248 = vsel %vm1245, %v1247, %v1243
    %v1249 = vmul.f32 1.0, %v1248
    %v1251 = vrot.slane %v1230, 2
    %v1253 = vxor.u32 %v1251, 2147483648
    %v1254 = vmul.f32 %v1253, 1.442695
    %v1255 = vpow.pop %v1254
    %v1256 = vadd.f32 %v1255, 1.0
    %v1257 = vrcp.pop %v1256
    %v1258 = vmul.f32 %v1256, %v1257
    %v1259 = vsub.f32 1.0, %v1258
    %v1260 = vmul.f32 %v1257, %v1259
    %v1261 = vadd.f32 %v1257, %v1260
    %vm1262 = vweird.f32 %v1256
    %vm1263 = vweird.f32 %v1257
    %vm1264 = vmor %vm1262, %vm1263
    %v1265 = vsel %vm1264, %v1257, %v1261
    %v1266 = vand.u32 2147483647, %v1256
    %vm1267 = vcmp.eq.f32.partialorder %v1266, 8.507059e+37
    %v1268 = vand.u32 %v1256, 2147483648
    %v1269 = vor.u32 1.1754944e-38, %v1268
    %v1270 = vsel %vm1267, %v1269, %v1265
    %v1271 = vmul.f32 1.0, %v1270
    %v1272 = vrot.slane %v1230, 4
    %v1274 = vtanh.pop %v1272
    %v1275 = vrot.slane %v1230, 6
    %v1277 = vxor.u32 %v1275, 2147483648
    %v1278 = vmul.f32 %v1277, 1.442695
    %v1279 = vpow.pop %v1278
    %v1280 = vadd.f32 %v1279, 1.0
    %v1281 = vrcp.pop %v1280
    %v1282 = vmul.f32 %v1280, %v1281
    %v1283 = vsub.f32 1.0, %v1282
    %v1284 = vmul.f32 %v1281, %v1283
    %v1285 = vadd.f32 %v1281, %v1284
    %vm1286 = vweird.f32 %v1280
    %vm1287 = vweird.f32 %v1281
    %vm1288 = vmor %vm1286, %vm1287
    %v1289 = vsel %vm1288, %v1281, %v1285
    %v1290 = vand.u32 2147483647, %v1280
    %vm1291 = vcmp.eq.f32.partialorder %v1290, 8.507059e+37
    %v1292 = vand.u32 %v1280, 2147483648
    %v1293 = vor.u32 1.1754944e-38, %v1292
    %v1294 = vsel %vm1291, %v1293, %v1289
    %v1295 = vmul.f32 1.0, %v1294
    %v1296 = vmul.f32 %v1271, %v1132
    %v1297 = vmul.f32 %v1249, %v1274
    %v1298 = vadd.f32 %v1296, %v1297
    %v1299 = vtanh.pop %v1298
    %v1300 = vmul.f32 %v1295, %v1299
    %s1301 = scalar_lea.vmem [#allocation10], 12
    %1302 = vst [vmem:[%s1301] sm:$0x3] %v1300
    %s1303 = scalar_lea.vmem [#allocation4], 56
    %v1304 = vld [vmem:[%s1303] sm:$0xff]
    %1305 = vmatpush.msra.mxu0 %v134
    %1306 = vmatpush.msra.mxu0 %v130
    %1307 = vmatpush.msra.mxu0 %v126
    %1308 = vmatpush.msra.mxu0 %v122
    %1309 = vmatpush.msra.mxu0 %v118
    %1310 = vmatpush.msra.mxu0 %v114
    %1311 = vmatpush.msra.mxu0 %v110
    %1312 = vmatpush.msra.mxu0 %v106
    %1313 = vmatpush.msra.mxu0 %v102
    %1314 = vmatpush.msra.mxu0 %v98
    %1315 = vmatpush.msra.mxu0 %v94
    %1316 = vmatpush.msra.mxu0 %v90
    %1317 = vmatpush.msra.mxu0 %v86
    %1318 = vmatpush.msra.mxu0 %v82
    %1319 = vmatpush.msra.mxu0 %v78
    %1320 = vmatpush.msra.mxu0 %v74
    %1321 = vmatmul.f32.gmra.mxu0 %v1300
    %v1322 = vpop.f32.mrf.mxu0
    %v1323 = vadd.f32 0.0, %v1322
    %1324 = vdwg.mxu0
    %1325 = vmatpush.msra.mxu0 %v135
    %1326 = vmatpush.msra.mxu0 %v131
    %1327 = vmatpush.msra.mxu0 %v127
    %1328 = vmatpush.msra.mxu0 %v123
    %1329 = vmatpush.msra.mxu0 %v119
    %1330 = vmatpush.msra.mxu0 %v115
    %1331 = vmatpush.msra.mxu0 %v111
    %1332 = vmatpush.msra.mxu0 %v107
    %1333 = vmatpush.msra.mxu0 %v103
    %1334 = vmatpush.msra.mxu0 %v99
    %1335 = vmatpush.msra.mxu0 %v95
    %1336 = vmatpush.msra.mxu0 %v91
    %1337 = vmatpush.msra.mxu0 %v87
    %1338 = vmatpush.msra.mxu0 %v83
    %1339 = vmatpush.msra.mxu0 %v79
    %1340 = vmatpush.msra.mxu0 %v75
    %1341 = vmatmul.f32.gmra.mxu0 %v1300
    %v1342 = vpop.f32.mrf.mxu0
    %v1343 = vadd.f32 0.0, %v1342
    %1344 = vdwg.mxu0
    %1345 = vmatpush.msra.mxu0 %v136
    %1346 = vmatpush.msra.mxu0 %v132
    %1347 = vmatpush.msra.mxu0 %v128
    %1348 = vmatpush.msra.mxu0 %v124
    %1349 = vmatpush.msra.mxu0 %v120
    %1350 = vmatpush.msra.mxu0 %v116
    %1351 = vmatpush.msra.mxu0 %v112
    %1352 = vmatpush.msra.mxu0 %v108
    %1353 = vmatpush.msra.mxu0 %v104
    %1354 = vmatpush.msra.mxu0 %v100
    %1355 = vmatpush.msra.mxu0 %v96
    %1356 = vmatpush.msra.mxu0 %v92
    %1357 = vmatpush.msra.mxu0 %v88
    %1358 = vmatpush.msra.mxu0 %v84
    %1359 = vmatpush.msra.mxu0 %v80
    %1360 = vmatpush.msra.mxu0 %v76
    %1361 = vmatmul.f32.gmra.mxu0 %v1300
    %v1362 = vpop.f32.mrf.mxu0
    %v1363 = vadd.f32 0.0, %v1362
    %1364 = vdwg.mxu0
    %1365 = vmatpush.msra.mxu0 %v137
    %1366 = vmatpush.msra.mxu0 %v133
    %1367 = vmatpush.msra.mxu0 %v129
    %1368 = vmatpush.msra.mxu0 %v125
    %1369 = vmatpush.msra.mxu0 %v121
    %1370 = vmatpush.msra.mxu0 %v117
    %1371 = vmatpush.msra.mxu0 %v113
    %1372 = vmatpush.msra.mxu0 %v109
    %1373 = vmatpush.msra.mxu0 %v105
    %1374 = vmatpush.msra.mxu0 %v101
    %1375 = vmatpush.msra.mxu0 %v97
    %1376 = vmatpush.msra.mxu0 %v93
    %1377 = vmatpush.msra.mxu0 %v89
    %1378 = vmatpush.msra.mxu0 %v85
    %1379 = vmatpush.msra.mxu0 %v81
    %1380 = vmatpush.msra.mxu0 %v77
    %1381 = vmatmul.f32.gmra.mxu0 %v1300
    %v1382 = vpop.f32.mrf.mxu0
    %v1383 = vadd.f32 0.0, %v1382
    %1384 = vdwg.mxu0
    %v1389 = vrot.slane %v1343, 6
    %v1390 = vrot.slane %v1363, 4
    %v1391 = vrot.slane %v1383, 2
    %v1392 = vsel %vm228, %v1323, %v1389
    %v1393 = vsel %vm230, %v1390, %v1391
    %v1394 = vsel %vm232, %v1392, %v1393
    %v1396 = vadd.f32 %v1304, %v1394
    %v1397 = vxor.u32 %v1396, 2147483648
    %v1398 = vmul.f32 %v1397, 1.442695
    %v1399 = vpow.pop %v1398
    %v1400 = vadd.f32 %v1399, 1.0
    %v1401 = vrcp.pop %v1400
    %v1402 = vmul.f32 %v1400, %v1401
    %v1403 = vsub.f32 1.0, %v1402
    %v1404 = vmul.f32 %v1401, %v1403
    %v1405 = vadd.f32 %v1401, %v1404
    %vm1406 = vweird.f32 %v1400
    %vm1407 = vweird.f32 %v1401
    %vm1408 = vmor %vm1406, %vm1407
    %v1409 = vsel %vm1408, %v1401, %v1405
    %v1410 = vand.u32 2147483647, %v1400
    %vm1411 = vcmp.eq.f32.partialorder %v1410, 8.507059e+37
    %v1412 = vand.u32 %v1400, 2147483648
    %v1413 = vor.u32 1.1754944e-38, %v1412
    %v1414 = vsel %vm1411, %v1413, %v1409
    %v1415 = vmul.f32 1.0, %v1414
    %v1417 = vrot.slane %v1396, 2
    %v1419 = vxor.u32 %v1417, 2147483648
    %v1420 = vmul.f32 %v1419, 1.442695
    %v1421 = vpow.pop %v1420
    %v1422 = vadd.f32 %v1421, 1.0
    %v1423 = vrcp.pop %v1422
    %v1424 = vmul.f32 %v1422, %v1423
    %v1425 = vsub.f32 1.0, %v1424
    %v1426 = vmul.f32 %v1423, %v1425
    %v1427 = vadd.f32 %v1423, %v1426
    %vm1428 = vweird.f32 %v1422
    %vm1429 = vweird.f32 %v1423
    %vm1430 = vmor %vm1428, %vm1429
    %v1431 = vsel %vm1430, %v1423, %v1427
    %v1432 = vand.u32 2147483647, %v1422
    %vm1433 = vcmp.eq.f32.partialorder %v1432, 8.507059e+37
    %v1434 = vand.u32 %v1422, 2147483648
    %v1435 = vor.u32 1.1754944e-38, %v1434
    %v1436 = vsel %vm1433, %v1435, %v1431
    %v1437 = vmul.f32 1.0, %v1436
    %v1438 = vrot.slane %v1396, 4
    %v1440 = vtanh.pop %v1438
    %v1441 = vrot.slane %v1396, 6
    %v1443 = vxor.u32 %v1441, 2147483648
    %v1444 = vmul.f32 %v1443, 1.442695
    %v1445 = vpow.pop %v1444
    %v1446 = vadd.f32 %v1445, 1.0
    %v1447 = vrcp.pop %v1446
    %v1448 = vmul.f32 %v1446, %v1447
    %v1449 = vsub.f32 1.0, %v1448
    %v1450 = vmul.f32 %v1447, %v1449
    %v1451 = vadd.f32 %v1447, %v1450
    %vm1452 = vweird.f32 %v1446
    %vm1453 = vweird.f32 %v1447
    %vm1454 = vmor %vm1452, %vm1453
    %v1455 = vsel %vm1454, %v1447, %v1451
    %v1456 = vand.u32 2147483647, %v1446
    %vm1457 = vcmp.eq.f32.partialorder %v1456, 8.507059e+37
    %v1458 = vand.u32 %v1446, 2147483648
    %v1459 = vor.u32 1.1754944e-38, %v1458
    %v1460 = vsel %vm1457, %v1459, %v1455
    %v1461 = vmul.f32 1.0, %v1460
    %v1462 = vmul.f32 %v1437, %v1298
    %v1463 = vmul.f32 %v1415, %v1440
    %v1464 = vadd.f32 %v1462, %v1463
    %v1465 = vtanh.pop %v1464
    %v1466 = vmul.f32 %v1461, %v1465
    %s1467 = scalar_lea.vmem [#allocation10], 14
    %1468 = vst [vmem:[%s1467] sm:$0x3] %v1466
    %1469 = vst [vmem:[#allocation2] sm:$0x3] %v1466
    %1470 = vst [vmem:[#allocation3] sm:$0x3] %v1464
    // Predicated region
    $region34: #{tpu_custom_call.1} parent=1 // pred_check
      %p1471 = pneg %p66
    $region35: #{tpu_custom_call.1} parent=1 // pred_check_branch
      %1473 = sbr.rel (%p1471) target = $region37
    $region36: #{tpu_custom_call.1} parent=1 // pred_region
      %1474 = vst [vmem:[#allocation11] sm:$0x3] %v1464
    $region37: #{tpu_custom_call.1} parent=1 // pred_fallthru
      _
    // Predicated region
    $region38: #{tpu_custom_call.1} parent=1 // pred_check
      _
    $region39: #{tpu_custom_call.1} parent=1 // pred_check_branch
      %1476 = sbr.rel (0) target = $region41
    $region40: #{tpu_custom_call.1} parent=1 // pred_region
      %1478 = vsyncadd [#allocation6], 0
      %s1479 = sshll.u32 [#allocation10], 4
      %s1480 = int_to_ptr.vmem [resolvable:$true] %s1479
      %s1481 = sshll.u32 %s4, 4
      %s1482 = int_to_ptr.hbm [resolvable:$true] %s1481
      %1487 = dma.vmem_to_hbm [thread:$0]  %s1480, 256, %s1482, [#allocation6], 32, 32, 2
    $region41: #{tpu_custom_call.1} parent=1 // pred_fallthru
      _
    // Predicated region
    $region42: #{tpu_custom_call.1} parent=1 // pred_check
      _
    $region43: #{tpu_custom_call.1} parent=1 // pred_check_branch
      %1489 = sbr.rel (0) target = $region45
    $region44: #{tpu_custom_call.1} parent=1 // pred_region
      %1491 = vsyncadd [#allocation12], 0
      %s1493 = sshll.u32 [#allocation11], 4
      %s1494 = int_to_ptr.vmem [resolvable:$true] %s1493
      %s1495 = sshll.u32 %s5, 4
      %s1496 = int_to_ptr.hbm [resolvable:$true] %s1495
      %1498 = dma.vmem_to_hbm [thread:$0]  %s1494, 32, %s1496, [#allocation12]
    $region45: #{tpu_custom_call.1} parent=1 // pred_fallthru
      _
    // Predicated region
    $region46: #{tpu_custom_call.1} parent=1 // pred_check
      _
    $region47: #{tpu_custom_call.1} parent=1 // pred_check_branch
      %1500 = sbr.rel (0) target = $region49
    $region48: #{tpu_custom_call.1} parent=1 // pred_region
      %1502 = dma.done [#allocation6], 256
    $region49: #{tpu_custom_call.1} parent=1 // pred_fallthru
      _
    // Predicated region
    $region50: #{tpu_custom_call.1} parent=1 // pred_check
      _
    $region51: #{tpu_custom_call.1} parent=1 // pred_check_branch
      %1504 = sbr.rel (0) target = $region53
    $region52: #{tpu_custom_call.1} parent=1 // pred_region
      %1506 = dma.done [#allocation12], 32
    $region53: #{tpu_custom_call.1} parent=1 // pred_fallthru
      _
    %1507 = vsyncpa [#allocation5], 1
    %1508 = vsyncpa [#allocation8], 1
    %1509 = vsyncpa [#allocation6], 1
    %1510 = vsyncpa [#allocation12], 1

</llo_original>
